<compile_context>
chip_gen: v7x
topology: tpu7x:2x2x1
jax: 0.10.0
libtpu: 0.0.40
codegen_flags: <defaults>
</compile_context>

<pallas_src>
from typing import NamedTuple

import numpy as np
import jax
import jax.numpy as jnp
from jax.experimental import pallas as pl
from jax.experimental.pallas import tpu as pltpu

EPS = 1e-5  # nn.BatchNorm2d default


# ---------------------------------------------------------------------------
# Host-side constant builders (one-time packing, numpy)
# ---------------------------------------------------------------------------
def _round_up(x, m):
    return ((x + m - 1) // m) * m


def _interp_matrix(n_in, n_out):
    """PyTorch Upsample(mode='bilinear', align_corners=True), 1-D, as a matrix."""
    A = np.zeros((n_out, n_in), np.float32)
    if n_in == 1 or n_out == 1:
        A[:, 0] = 1.0
        return A
    scale = (n_in - 1) / (n_out - 1)
    for i in range(n_out):
        src = i * scale
        i0 = min(int(np.floor(src)), n_in - 1)
        i1 = min(i0 + 1, n_in - 1)
        frac = src - i0
        A[i, i0] += 1.0 - frac
        A[i, i1] += frac
    return A


def _row_toeplitz(w_oihw, W):
    """Repack a 3x3 conv weight (Cout, Cin, 3, 3) into per-ky row-Toeplitz
    matrices (3, W*Cin, W*Cout) with the W zero-padding folded in:
      out[(n,h), wo*Cout+co] += in[(n,h+ky-1), wi*Cin+ci] * T[ky, wi*Cin+ci, wo*Cout+co]
    """
    Cout, Cin, _, _ = w_oihw.shape
    T = np.zeros((3, W * Cin, W * Cout), np.float32)
    for ky in range(3):
        for kx in range(3):
            tap = w_oihw[:, :, ky, kx].T                       # (Cin, Cout)
            for wo in range(W):
                wi = wo + kx - 1
                if 0 <= wi < W:
                    T[ky, wi * Cin:(wi + 1) * Cin,
                      wo * Cout:(wo + 1) * Cout] = tap
    return T


class UpParams(NamedTuple):
    ah: jax.Array    # (Hp, H1)  f32  row interp + F.pad rows (+ trailing zeros)
    t1: jax.Array    # (3, W*C2 + W1*C1, W*Cm) bf16  merged conv1 Toeplitz (AwC folded)
    t2: jax.Array    # (3, W*Cm, W*Co) bf16
    g1: jax.Array    # (1, W*Cm) f32   BN1 gamma, tiled over w
    b1: jax.Array    # (1, W*Cm) f32
    g2: jax.Array    # (1, W*Co) f32
    b2: jax.Array    # (1, W*Co) f32
    red1: jax.Array  # (W*Cm, Cp) f32  per-channel reduce, pre-scaled by 1/(N*H*W)
    bc1: jax.Array   # (Cp, W*Cm) f32  broadcast back to (w, c) lanes
    red2: jax.Array  # (W*Co, Cp) f32
    bc2: jax.Array   # (Cp, W*Co) f32
    mask: jax.Array  # (N*Hp, 1) f32   1.0 on valid rows, 0.0 on pad/garbage rows


def build_up_params(w1, g1, b1, w2, g2, b2, *, N, C1, C2, H1, W1, H, W):
    """One-time host-side weight/interp repacking (call once, outside jit)."""
    Hp = _round_up(H + 1, 8)                 # per-image slab rows (>= H+1, 8-aligned)
    w1 = np.asarray(w1, np.float32)
    w2 = np.asarray(w2, np.float32)
    Cm, Co = w1.shape[0], w2.shape[0]
    assert w1.shape[1] == C1 + C2 and w2.shape[1] == Cm

    dY, dX = H - 2 * H1, W - 2 * W1
    # Row interp + top/bottom F.pad rows; rows H..Hp-1 stay zero (halo / image gap).
    ah = np.zeros((Hp, H1), np.float32)
    ah[dY // 2: dY // 2 + 2 * H1, :] = _interp_matrix(H1, 2 * H1)

    # Column interp + left/right F.pad, acting on (w, c)-interleaved lanes.
    aw = np.zeros((W, W1), np.float32)
    aw[dX // 2: dX // 2 + 2 * W1, :] = _interp_matrix(W1, 2 * W1)
    AwC = np.kron(aw.T, np.eye(C1, dtype=np.float32))          # (W1*C1, W*C1)

    # conv1 Toeplitz: x2 stream + x1 stream with AwC folded in (all in f32),
    # merged along K -> ONE matmul per ky with K = W*C2 + W1*C1.
    T1a = _row_toeplitz(w1[:, :C2], W)                          # (3, W*C2, W*Cm)
    T1b = _row_toeplitz(w1[:, C2:], W)                          # (3, W*C1, W*Cm)
    T1b = np.einsum('ij,kjm->kim', AwC, T1b)                    # (3, W1*C1, W*Cm)
    T1 = np.concatenate([T1a, T1b], axis=1)                     # (3, W*C2+W1*C1, W*Cm)
    T2 = _row_toeplitz(w2, W)                                    # (3, W*Cm, W*Co)

    count = float(N * H * W)

    def reduce_bcast(C):
        Cp = _round_up(max(C, 8), 8)
        ch = np.arange(W * C) % C
        red = np.zeros((W * C, Cp), np.float32)
        red[np.arange(W * C), ch] = 1.0 / count
        bc = np.zeros((Cp, W * C), np.float32)
        bc[ch, np.arange(W * C)] = 1.0
        return red, bc

    red1, bc1 = reduce_bcast(Cm)
    red2, bc2 = reduce_bcast(Co)

    mask = np.zeros((N * Hp, 1), np.float32)
    for n in range(N):
        mask[n * Hp:n * Hp + H, 0] = 1.0

    f32, bf16 = jnp.float32, jnp.bfloat16
    return UpParams(
        ah=jnp.asarray(ah, f32),
        t1=jnp.asarray(T1, bf16),
        t2=jnp.asarray(T2, bf16),
        g1=jnp.asarray(np.tile(np.asarray(g1, np.float32), W).reshape(1, W * Cm)),
        b1=jnp.asarray(np.tile(np.asarray(b1, np.float32), W).reshape(1, W * Cm)),
        g2=jnp.asarray(np.tile(np.asarray(g2, np.float32), W).reshape(1, W * Co)),
        b2=jnp.asarray(np.tile(np.asarray(b2, np.float32), W).reshape(1, W * Co)),
        red1=jnp.asarray(red1), bc1=jnp.asarray(bc1),
        red2=jnp.asarray(red2), bc2=jnp.asarray(bc2),
        mask=jnp.asarray(mask))


# ---------------------------------------------------------------------------
# The single fused kernel
# ---------------------------------------------------------------------------
def up_double_conv_kernel(x2s_ref, x1_ref, ah_ref, t1_ref, t2_ref,
                          g1_ref, b1_ref, g2_ref, b2_ref,
                          red1_ref, bc1_ref, red2_ref, bc2_ref, mask_ref,
                          o_ref, xin_ref):
    # x2s_ref : (N*Hp, W*C2)  f32  skip connection, rows pre-padded per image
    # x1_ref  : (N, H1, W1*C1) f32 low-res input (NHWC rows)
    # ah_ref  : (Hp, H1)       f32 row interp + F.pad (+ trailing zero rows)
    # t1_ref  : (3, W*C2+W1*C1, W*Cm) bf16  merged conv1 Toeplitz
    # t2_ref  : (3, W*Cm, W*Co)       bf16
    # o_ref   : (H, N*W*Co)    f32  lane-dense output (images packed along lanes)
    # xin_ref : (N*Hp, W*C2+W1*C1) f32 scratch: merged conv1 input slab
    f32, bf16 = jnp.float32, jnp.bfloat16
    NHp, K1 = xin_ref.shape
    N = x1_ref.shape[0]
    Hp = NHp // N
    H = o_ref.shape[0]
    WC2 = x2s_ref.shape[1]
    WCm = t1_ref.shape[2]
    WCo = t2_ref.shape[2]

    # --- stage merged conv1 input slab: both writes are lane-contiguous -----
    #   lanes [0:WC2]  = x2 skip connection
    #   lanes [WC2:K1] = bilinear row-interp of x1 (col interp + F.pad folded
    #                    into the conv1 Toeplitz weights on the host)
    xin_ref[:, :WC2] = x2s_ref[...]
    ah = ah_ref[...]
    for n in range(N):                                   # static unroll, N small
        xin_ref[n * Hp:(n + 1) * Hp, WC2:] = jnp.dot(
            ah, x1_ref[n], preferred_element_type=f32)
    xin = xin_ref[...]
    mask = mask_ref[...]                                 # (NHp, 1)

    def conv3(x, t_ref, wcout):
        # 3x3 conv as 3 row-Toeplitz matmuls; the ky row shift is a circular
        # sublane roll (XLU) on the 2-D slab — zero pad rows between images
        # provide the halo, so no slice/reshape relayout copies are needed.
        acc = jnp.zeros((NHp, wcout), f32)
        for ky in range(3):
            sh = (1 - ky) % NHp
            xs = x if sh == 0 else pltpu.roll(x, shift=sh, axis=0)
            acc = acc + jnp.dot(xs.astype(bf16), t_ref[ky],
                                preferred_element_type=f32)
        return acc

    def bn_relu(acc, red_ref, bc_ref, g_ref, b_ref):
        # Train-mode BatchNorm over the valid rows only (mask excludes the
        # pad/garbage rows), one-pass stats, factored channel reduce/broadcast.
        am = acc * mask
        s = jnp.sum(am, axis=0, keepdims=True)           # (1, W*C)
        q = jnp.sum(am * acc, axis=0, keepdims=True)
        mean = jnp.dot(jnp.dot(s, red_ref[...]), bc_ref[...])   # /count folded in red
        ex2 = jnp.dot(jnp.dot(q, red_ref[...]), bc_ref[...])
        var = ex2 - mean * mean
        scl = g_ref[...] * jax.lax.rsqrt(var + EPS)
        off = b_ref[...] - mean * scl
        return jnp.maximum(acc * scl + off, 0.0)

    acc1 = conv3(xin, t1_ref, WCm)
    mid = bn_relu(acc1, red1_ref, bc1_ref, g1_ref, b1_ref) * mask   # zero pad rows
    acc2 = conv3(mid, t2_ref, WCo)
    y2 = bn_relu(acc2, red2_ref, bc2_ref, g2_ref, b2_ref)

    # --- lane-dense output: image n -> lanes [n*W*Co : (n+1)*W*Co] ----------
    for n in range(N):
        o_ref[:, n * WCo:(n + 1) * WCo] = (
            y2[n * Hp:n * Hp + H, :].astype(o_ref.dtype))


# ---------------------------------------------------------------------------
# Wrapper: Up.forward (bilinear=True).  x1/x2 NCHW; constants pre-packed.
# ---------------------------------------------------------------------------
@jax.jit
def up_forward(x1, x2, params: UpParams):
    N, C1, H1, W1 = x1.shape
    N2, C2, H, W = x2.shape
    assert N2 == N
    Hp = _round_up(H + 1, 8)
    K1 = params.t1.shape[1]
    WCm = params.t1.shape[2]
    WCo = params.t2.shape[2]
    Co = WCo // W
    f32 = jnp.float32

    # NCHW -> lane-dense NHWC rows; x2 pre-padded to the per-image slab height
    # (aligned layout plumbing only — all compute stays inside the kernel).
    x2_rows = jnp.transpose(x2, (0, 2, 3, 1)).reshape(N, H, W * C2).astype(f32)
    x2_slab = jnp.pad(x2_rows, ((0, 0), (0, Hp - H), (0, 0))).reshape(N * Hp, W * C2)
    x1_rows = jnp.transpose(x1, (0, 2, 3, 1)).reshape(N, H1, W1 * C1).astype(f32)

    args = (x2_slab, x1_rows, params.ah, params.t1, params.t2,
            params.g1, params.b1, params.g2, params.b2,
            params.red1, params.bc1, params.red2, params.bc2, params.mask)

    flops = 2 * (N * Hp * H1 * (W1 * C1)
                 + 3 * N * Hp * K1 * WCm
                 + 3 * N * Hp * WCm * WCo)
    bytes_accessed = (sum(int(np.prod(a.shape)) * a.dtype.itemsize for a in args)
                      + H * N * WCo * 4)

    def full(shape):
        return pl.BlockSpec(shape, lambda i: (0,) * len(shape))

    # TODO(synk): for production sizes, tile H on a "parallel" grid axis with a 1-row halo and finalize BN from per-tile partial sums (fits v7x 64 MiB VMEM, uses both TCs); at these toy sizes a single block is optimal.
    out2d = pl.pallas_call(
        up_double_conv_kernel,
        out_shape=jax.ShapeDtypeStruct((H, N * WCo), jnp.float32),
        grid=(1,),
        in_specs=[full(a.shape) for a in args],
        out_specs=full((H, N * WCo)),
        scratch_shapes=[pltpu.VMEM((N * Hp, K1), jnp.float32)],
        compiler_params=pltpu.CompilerParams(
            dimension_semantics=("arbitrary",),
            vmem_limit_bytes=32 * 1024 * 1024),
        cost_estimate=pl.CostEstimate(
            flops=flops, transcendentals=WCm + WCo,
            bytes_accessed=bytes_accessed),
    )(*args)

    # (H, N*W*Co) lane-packed slab -> NCHW (wrapper-side layout glue only).
    return jnp.transpose(out2d.reshape(H, N, W, Co), (1, 3, 0, 2))


# ---------------------------------------------------------------------------
# Pure-JAX reference (XLA path, f32 HIGHEST) for the correctness check
# ---------------------------------------------------------------------------
def reference_up(x1, x2, w1, g1, b1, w2, g2, b2):
    N, C1, H1, W1 = x1.shape
    ah = jnp.asarray(_interp_matrix(H1, 2 * H1))
    aw = jnp.asarray(_interp_matrix(W1, 2 * W1))
    t = jnp.einsum('ih,nchw->nciw', ah, x1)
    x1u = jnp.einsum('jw,nciw->ncij', aw, t)
    dY = x2.shape[2] - x1u.shape[2]
    dX = x2.shape[3] - x1u.shape[3]
    x1u = jnp.pad(x1u, ((0, 0), (0, 0),
                        (dY // 2, dY - dY // 2),
                        (dX // 2, dX - dX // 2)))
    x = jnp.concatenate([x2, x1u], axis=1)

    def conv_bn_relu(x, w, g, b):
        y = jax.lax.conv_general_dilated(
            x, w, (1, 1), 'SAME',
            dimension_numbers=('NCHW', 'OIHW', 'NCHW'),
            precision=jax.lax.Precision.HIGHEST)
        mean = jnp.mean(y, axis=(0, 2, 3), keepdims=True)
        var = jnp.mean((y - mean) ** 2, axis=(0, 2, 3), keepdims=True)
        y = (y - mean) * jax.lax.rsqrt(var + EPS)
        y = y * g.reshape(1, -1, 1, 1) + b.reshape(1, -1, 1, 1)
        return jnp.maximum(y, 0.0)

    return conv_bn_relu(conv_bn_relu(x, w1, g1, b1), w2, g2, b2)


if __name__ == "__main__":
    key = jax.random.PRNGKey(0)
    # Up(in_channels=8, out_channels=4, bilinear=True):
    #   x1: (N, 4, 8, 8) -> upsampled to 16x16;  x2: (N, 4, 16, 16); concat -> 8 ch
    N, C1, H1, W1 = 2, 4, 8, 8
    C2, H, W = 4, 16, 16
    in_ch, out_ch = C1 + C2, 4
    mid_ch = in_ch // 2

    ks = jax.random.split(key, 8)
    x1 = jax.random.normal(ks[0], (N, C1, H1, W1), jnp.float32)
    x2 = jax.random.normal(ks[1], (N, C2, H, W), jnp.float32)
    w1 = 0.2 * jax.random.normal(ks[2], (mid_ch, in_ch, 3, 3), jnp.float32)
    w2 = 0.2 * jax.random.normal(ks[3], (out_ch, mid_ch, 3, 3), jnp.float32)
    g1 = 1.0 + 0.1 * jax.random.normal(ks[4], (mid_ch,), jnp.float32)
    b1 = 0.1 * jax.random.normal(ks[5], (mid_ch,), jnp.float32)
    g2 = 1.0 + 0.1 * jax.random.normal(ks[6], (out_ch,), jnp.float32)
    b2 = 0.1 * jax.random.normal(ks[7], (out_ch,), jnp.float32)

    # One-time host-side constant packing, hoisted out of the jitted forward.
    params = build_up_params(w1, g1, b1, w2, g2, b2,
                             N=N, C1=C1, C2=C2, H1=H1, W1=W1, H=H, W=W)

    out = jax.block_until_ready(up_forward(x1, x2, params))
    ref = reference_up(x1, x2, w1, g1, b1, w2, g2, b2)
    assert out.shape == ref.shape

    # bf16 MXU operands bound worst-case abs error to ~1e-2; 3e-2 gives margin
    # while still catching layout / indexing bugs (values are O(1) post-BN).
    np.testing.assert_allclose(np.asarray(out), np.asarray(ref),
                               rtol=3e-2, atol=3e-2)
    print("KERNEL_OK")
</pallas_src>

<mosaic_0001>
module attributes {stable_mosaic.version = 11 : i64} {
  func.func @up_double_conv_kernel(%arg0: i32, %arg1: memref<48x64xf32, #tpu.memory_space<vmem>>, %arg2: memref<2x8x32xf32, #tpu.memory_space<vmem>>, %arg3: memref<24x8xf32, #tpu.memory_space<vmem>>, %arg4: memref<3x96x64xbf16, #tpu.memory_space<vmem>>, %arg5: memref<3x64x64xbf16, #tpu.memory_space<vmem>>, %arg6: memref<1x64xf32, #tpu.memory_space<vmem>>, %arg7: memref<1x64xf32, #tpu.memory_space<vmem>>, %arg8: memref<1x64xf32, #tpu.memory_space<vmem>>, %arg9: memref<1x64xf32, #tpu.memory_space<vmem>>, %arg10: memref<64x8xf32, #tpu.memory_space<vmem>>, %arg11: memref<8x64xf32, #tpu.memory_space<vmem>>, %arg12: memref<64x8xf32, #tpu.memory_space<vmem>>, %arg13: memref<8x64xf32, #tpu.memory_space<vmem>>, %arg14: memref<48x1xf32, #tpu.memory_space<vmem>>, %arg15: memref<16x128xf32, #tpu.memory_space<vmem>>, %arg16: memref<48x96xf32, #tpu.memory_space<vmem>>) attributes {dimension_semantics = [#tpu.dimension_semantics<arbitrary>], iteration_bounds = array<i64: 1>, scalar_prefetch = 0 : i64, scratch_operands = 1 : i64, tpu.core_type = #tpu.core_type<tc>, window_params = [{pipeline_mode = #tpu.pipeline_mode<synchronous>, transform_indices = @transform_0, window_bounds = array<i64: 48, 64>}, {pipeline_mode = #tpu.pipeline_mode<synchronous>, transform_indices = @transform_1, window_bounds = array<i64: 2, 8, 32>}, {pipeline_mode = #tpu.pipeline_mode<synchronous>, transform_indices = @transform_2, window_bounds = array<i64: 24, 8>}, {pipeline_mode = #tpu.pipeline_mode<synchronous>, transform_indices = @transform_3, window_bounds = array<i64: 3, 96, 64>}, {pipeline_mode = #tpu.pipeline_mode<synchronous>, transform_indices = @transform_4, window_bounds = array<i64: 3, 64, 64>}, {pipeline_mode = #tpu.pipeline_mode<synchronous>, transform_indices = @transform_5, window_bounds = array<i64: 1, 64>}, {pipeline_mode = #tpu.pipeline_mode<synchronous>, transform_indices = @transform_6, window_bounds = array<i64: 1, 64>}, {pipeline_mode = #tpu.pipeline_mode<synchronous>, transform_indices = @transform_7, window_bounds = array<i64: 1, 64>}, {pipeline_mode = #tpu.pipeline_mode<synchronous>, transform_indices = @transform_8, window_bounds = array<i64: 1, 64>}, {pipeline_mode = #tpu.pipeline_mode<synchronous>, transform_indices = @transform_9, window_bounds = array<i64: 64, 8>}, {pipeline_mode = #tpu.pipeline_mode<synchronous>, transform_indices = @transform_10, window_bounds = array<i64: 8, 64>}, {pipeline_mode = #tpu.pipeline_mode<synchronous>, transform_indices = @transform_11, window_bounds = array<i64: 64, 8>}, {pipeline_mode = #tpu.pipeline_mode<synchronous>, transform_indices = @transform_12, window_bounds = array<i64: 8, 64>}, {pipeline_mode = #tpu.pipeline_mode<synchronous>, transform_indices = @transform_13, window_bounds = array<i64: 48, 1>}, {pipeline_mode = #tpu.pipeline_mode<synchronous>, transform_indices = @transform_14, window_bounds = array<i64: 16, 128>}]} {
    %c0 = arith.constant 0 : index
    %c0_0 = arith.constant 0 : index
    %0 = vector.load %arg1[%c0, %c0_0] : memref<48x64xf32, #tpu.memory_space<vmem>>, vector<48x64xf32>
    %c0_1 = arith.constant 0 : index
    %c0_2 = arith.constant 0 : index
    %1 = vector.load %arg16[%c0_1, %c0_2] : memref<48x96xf32, #tpu.memory_space<vmem>>, vector<48x64xf32>
    tpu.vector_store %arg16[%c0_1, %c0_2], %0 {strides = array<i32>} : memref<48x96xf32, #tpu.memory_space<vmem>>, vector<48x64xf32>,
    %c0_3 = arith.constant 0 : index
    %c0_4 = arith.constant 0 : index
    %2 = vector.load %arg3[%c0_3, %c0_4] : memref<24x8xf32, #tpu.memory_space<vmem>>, vector<24x8xf32>
    %c0_5 = arith.constant 0 : index
    %c0_6 = arith.constant 0 : index
    %c0_7 = arith.constant 0 : index
    %3 = vector.load %arg2[%c0_5, %c0_6, %c0_7] : memref<2x8x32xf32, #tpu.memory_space<vmem>>, vector<1x8x32xf32>
    %4 = vector.shape_cast %3 : vector<1x8x32xf32> to vector<8x32xf32>
    %cst = arith.constant dense<0.000000e+00> : vector<24x32xf32>
    %5 = tpu.matmul %2, %4, %cst {dimension_numbers = #tpu.dot_dimension_numbers<[1], [0], [0], [1], [0, 0, 1, 1], [], []>} : vector<24x8xf32>, vector<8x32xf32>, vector<24x32xf32> -> vector<24x32xf32>
    %c0_8 = arith.constant 0 : index
    %c64 = arith.constant 64 : index
    %6 = vector.load %arg16[%c0_8, %c64] : memref<48x96xf32, #tpu.memory_space<vmem>>, vector<24x32xf32>
    tpu.vector_store %arg16[%c0_8, %c64], %5 {strides = array<i32>} : memref<48x96xf32, #tpu.memory_space<vmem>>, vector<24x32xf32>,
    %c1 = arith.constant 1 : index
    %c0_9 = arith.constant 0 : index
    %c0_10 = arith.constant 0 : index
    %7 = vector.load %arg2[%c1, %c0_9, %c0_10] : memref<2x8x32xf32, #tpu.memory_space<vmem>>, vector<1x8x32xf32>
    %8 = vector.shape_cast %7 : vector<1x8x32xf32> to vector<8x32xf32>
    %cst_11 = arith.constant dense<0.000000e+00> : vector<24x32xf32>
    %9 = tpu.matmul %2, %8, %cst_11 {dimension_numbers = #tpu.dot_dimension_numbers<[1], [0], [0], [1], [0, 0, 1, 1], [], []>} : vector<24x8xf32>, vector<8x32xf32>, vector<24x32xf32> -> vector<24x32xf32>
    %c24 = arith.constant 24 : index
    %c64_12 = arith.constant 64 : index
    %10 = vector.load %arg16[%c24, %c64_12] : memref<48x96xf32, #tpu.memory_space<vmem>>, vector<24x32xf32>
    tpu.vector_store %arg16[%c24, %c64_12], %9 {strides = array<i32>} : memref<48x96xf32, #tpu.memory_space<vmem>>, vector<24x32xf32>,
    %c0_13 = arith.constant 0 : index
    %c0_14 = arith.constant 0 : index
    %11 = vector.load %arg16[%c0_13, %c0_14] : memref<48x96xf32, #tpu.memory_space<vmem>>, vector<48x96xf32>
    %c0_15 = arith.constant 0 : index
    %c0_16 = arith.constant 0 : index
    %12 = vector.load %arg14[%c0_15, %c0_16] : memref<48x1xf32, #tpu.memory_space<vmem>>, vector<48x1xf32>
    %cst_17 = arith.constant 0.000000e+00 : f32
    %13 = vector.broadcast %cst_17 : f32 to vector<48x64xf32>
    %c1_i32 = arith.constant 1 : i32
    %14 = tpu.dynamic_rotate %11 by %c1_i32 dim 0 : vector<48x96xf32>, i32 -> vector<48x96xf32>
    %15 = arith.truncf %14 : vector<48x96xf32> to vector<48x96xbf16>
    %c0_18 = arith.constant 0 : index
    %c0_19 = arith.constant 0 : index
    %c0_20 = arith.constant 0 : index
    %16 = vector.load %arg4[%c0_18, %c0_19, %c0_20] : memref<3x96x64xbf16, #tpu.memory_space<vmem>>, vector<1x96x64xbf16>
    %17 = vector.shape_cast %16 : vector<1x96x64xbf16> to vector<96x64xbf16>
    %cst_21 = arith.constant dense<0.000000e+00> : vector<48x64xf32>
    %18 = tpu.matmul %15, %17, %cst_21 {dimension_numbers = #tpu.dot_dimension_numbers<[1], [0], [0], [1], [0, 0, 1, 1], [], []>} : vector<48x96xbf16>, vector<96x64xbf16>, vector<48x64xf32> -> vector<48x64xf32>
    %19 = arith.addf %13, %18 : vector<48x64xf32>
    %20 = arith.truncf %11 : vector<48x96xf32> to vector<48x96xbf16>
    %c1_22 = arith.constant 1 : index
    %c0_23 = arith.constant 0 : index
    %c0_24 = arith.constant 0 : index
    %21 = vector.load %arg4[%c1_22, %c0_23, %c0_24] : memref<3x96x64xbf16, #tpu.memory_space<vmem>>, vector<1x96x64xbf16>
    %22 = vector.shape_cast %21 : vector<1x96x64xbf16> to vector<96x64xbf16>
    %cst_25 = arith.constant dense<0.000000e+00> : vector<48x64xf32>
    %23 = tpu.matmul %20, %22, %cst_25 {dimension_numbers = #tpu.dot_dimension_numbers<[1], [0], [0], [1], [0, 0, 1, 1], [], []>} : vector<48x96xbf16>, vector<96x64xbf16>, vector<48x64xf32> -> vector<48x64xf32>
    %24 = arith.addf %19, %23 : vector<48x64xf32>
    %c47_i32 = arith.constant 47 : i32
    %25 = tpu.dynamic_rotate %11 by %c47_i32 dim 0 : vector<48x96xf32>, i32 -> vector<48x96xf32>
    %26 = arith.truncf %25 : vector<48x96xf32> to vector<48x96xbf16>
    %c2 = arith.constant 2 : index
    %c0_26 = arith.constant 0 : index
    %c0_27 = arith.constant 0 : index
    %27 = vector.load %arg4[%c2, %c0_26, %c0_27] : memref<3x96x64xbf16, #tpu.memory_space<vmem>>, vector<1x96x64xbf16>
    %28 = vector.shape_cast %27 : vector<1x96x64xbf16> to vector<96x64xbf16>
    %cst_28 = arith.constant dense<0.000000e+00> : vector<48x64xf32>
    %29 = tpu.matmul %26, %28, %cst_28 {dimension_numbers = #tpu.dot_dimension_numbers<[1], [0], [0], [1], [0, 0, 1, 1], [], []>} : vector<48x96xbf16>, vector<96x64xbf16>, vector<48x64xf32> -> vector<48x64xf32>
    %30 = arith.addf %24, %29 : vector<48x64xf32>
    %31 = vector.broadcast %12 : vector<48x1xf32> to vector<48x64xf32>
    %32 = arith.mulf %30, %31 : vector<48x64xf32>
    %cst_29 = arith.constant dense<0.000000e+00> : vector<64xf32>
    %33 = vector.multi_reduction <add>, %32, %cst_29 [0] : vector<48x64xf32> to vector<64xf32>
    %34 = vector.shape_cast %33 : vector<64xf32> to vector<1x64xf32>
    %35 = arith.mulf %32, %30 : vector<48x64xf32>
    %cst_30 = arith.constant dense<0.000000e+00> : vector<64xf32>
    %36 = vector.multi_reduction <add>, %35, %cst_30 [0] : vector<48x64xf32> to vector<64xf32>
    %37 = vector.shape_cast %36 : vector<64xf32> to vector<1x64xf32>
    %c0_31 = arith.constant 0 : index
    %c0_32 = arith.constant 0 : index
    %38 = vector.load %arg10[%c0_31, %c0_32] : memref<64x8xf32, #tpu.memory_space<vmem>>, vector<64x8xf32>
    %cst_33 = arith.constant dense<0.000000e+00> : vector<1x8xf32>
    %39 = tpu.matmul %34, %38, %cst_33 {dimension_numbers = #tpu.dot_dimension_numbers<[1], [0], [0], [1], [0, 0, 1, 1], [], []>} : vector<1x64xf32>, vector<64x8xf32>, vector<1x8xf32> -> vector<1x8xf32>
    %c0_34 = arith.constant 0 : index
    %c0_35 = arith.constant 0 : index
    %40 = vector.load %arg11[%c0_34, %c0_35] : memref<8x64xf32, #tpu.memory_space<vmem>>, vector<8x64xf32>
    %cst_36 = arith.constant dense<0.000000e+00> : vector<1x64xf32>
    %41 = tpu.matmul %39, %40, %cst_36 {dimension_numbers = #tpu.dot_dimension_numbers<[1], [0], [0], [1], [0, 0, 1, 1], [], []>} : vector<1x8xf32>, vector<8x64xf32>, vector<1x64xf32> -> vector<1x64xf32>
    %c0_37 = arith.constant 0 : index
    %c0_38 = arith.constant 0 : index
    %42 = vector.load %arg10[%c0_37, %c0_38] : memref<64x8xf32, #tpu.memory_space<vmem>>, vector<64x8xf32>
    %cst_39 = arith.constant dense<0.000000e+00> : vector<1x8xf32>
    %43 = tpu.matmul %37, %42, %cst_39 {dimension_numbers = #tpu.dot_dimension_numbers<[1], [0], [0], [1], [0, 0, 1, 1], [], []>} : vector<1x64xf32>, vector<64x8xf32>, vector<1x8xf32> -> vector<1x8xf32>
    %c0_40 = arith.constant 0 : index
    %c0_41 = arith.constant 0 : index
    %44 = vector.load %arg11[%c0_40, %c0_41] : memref<8x64xf32, #tpu.memory_space<vmem>>, vector<8x64xf32>
    %cst_42 = arith.constant dense<0.000000e+00> : vector<1x64xf32>
    %45 = tpu.matmul %43, %44, %cst_42 {dimension_numbers = #tpu.dot_dimension_numbers<[1], [0], [0], [1], [0, 0, 1, 1], [], []>} : vector<1x8xf32>, vector<8x64xf32>, vector<1x64xf32> -> vector<1x64xf32>
    %46 = arith.mulf %41, %41 : vector<1x64xf32>
    %47 = arith.subf %45, %46 : vector<1x64xf32>
    %c0_43 = arith.constant 0 : index
    %c0_44 = arith.constant 0 : index
    %48 = vector.load %arg6[%c0_43, %c0_44] : memref<1x64xf32, #tpu.memory_space<vmem>>, vector<1x64xf32>
    %cst_45 = arith.constant 9.99999974E-6 : f32
    %49 = vector.broadcast %cst_45 : f32 to vector<1x64xf32>
    %50 = arith.addf %47, %49 : vector<1x64xf32>
    %51 = math.rsqrt %50 : vector<1x64xf32>
    %52 = arith.mulf %48, %51 : vector<1x64xf32>
    %c0_46 = arith.constant 0 : index
    %c0_47 = arith.constant 0 : index
    %53 = vector.load %arg7[%c0_46, %c0_47] : memref<1x64xf32, #tpu.memory_space<vmem>>, vector<1x64xf32>
    %54 = arith.mulf %41, %52 : vector<1x64xf32>
    %55 = arith.subf %53, %54 : vector<1x64xf32>
    %56 = vector.broadcast %52 : vector<1x64xf32> to vector<48x64xf32>
    %57 = arith.mulf %30, %56 : vector<48x64xf32>
    %58 = vector.broadcast %55 : vector<1x64xf32> to vector<48x64xf32>
    %59 = arith.addf %57, %58 : vector<48x64xf32>
    %cst_48 = arith.constant 0.000000e+00 : f32
    %60 = vector.broadcast %cst_48 : f32 to vector<48x64xf32>
    %61 = arith.maximumf %59, %60 : vector<48x64xf32>
    %62 = vector.broadcast %12 : vector<48x1xf32> to vector<48x64xf32>
    %63 = arith.mulf %61, %62 : vector<48x64xf32>
    %cst_49 = arith.constant 0.000000e+00 : f32
    %64 = vector.broadcast %cst_49 : f32 to vector<48x64xf32>
    %c1_i32_50 = arith.constant 1 : i32
    %65 = tpu.dynamic_rotate %63 by %c1_i32_50 dim 0 : vector<48x64xf32>, i32 -> vector<48x64xf32>
    %66 = arith.truncf %65 : vector<48x64xf32> to vector<48x64xbf16>
    %c0_51 = arith.constant 0 : index
    %c0_52 = arith.constant 0 : index
    %c0_53 = arith.constant 0 : index
    %67 = vector.load %arg5[%c0_51, %c0_52, %c0_53] : memref<3x64x64xbf16, #tpu.memory_space<vmem>>, vector<1x64x64xbf16>
    %68 = vector.shape_cast %67 : vector<1x64x64xbf16> to vector<64x64xbf16>
    %cst_54 = arith.constant dense<0.000000e+00> : vector<48x64xf32>
    %69 = tpu.matmul %66, %68, %cst_54 {dimension_numbers = #tpu.dot_dimension_numbers<[1], [0], [0], [1], [0, 0, 1, 1], [], []>} : vector<48x64xbf16>, vector<64x64xbf16>, vector<48x64xf32> -> vector<48x64xf32>
    %70 = arith.addf %64, %69 : vector<48x64xf32>
    %71 = arith.truncf %63 : vector<48x64xf32> to vector<48x64xbf16>
    %c1_55 = arith.constant 1 : index
    %c0_56 = arith.constant 0 : index
    %c0_57 = arith.constant 0 : index
    %72 = vector.load %arg5[%c1_55, %c0_56, %c0_57] : memref<3x64x64xbf16, #tpu.memory_space<vmem>>, vector<1x64x64xbf16>
    %73 = vector.shape_cast %72 : vector<1x64x64xbf16> to vector<64x64xbf16>
    %cst_58 = arith.constant dense<0.000000e+00> : vector<48x64xf32>
    %74 = tpu.matmul %71, %73, %cst_58 {dimension_numbers = #tpu.dot_dimension_numbers<[1], [0], [0], [1], [0, 0, 1, 1], [], []>} : vector<48x64xbf16>, vector<64x64xbf16>, vector<48x64xf32> -> vector<48x64xf32>
    %75 = arith.addf %70, %74 : vector<48x64xf32>
    %c47_i32_59 = arith.constant 47 : i32
    %76 = tpu.dynamic_rotate %63 by %c47_i32_59 dim 0 : vector<48x64xf32>, i32 -> vector<48x64xf32>
    %77 = arith.truncf %76 : vector<48x64xf32> to vector<48x64xbf16>
    %c2_60 = arith.constant 2 : index
    %c0_61 = arith.constant 0 : index
    %c0_62 = arith.constant 0 : index
    %78 = vector.load %arg5[%c2_60, %c0_61, %c0_62] : memref<3x64x64xbf16, #tpu.memory_space<vmem>>, vector<1x64x64xbf16>
    %79 = vector.shape_cast %78 : vector<1x64x64xbf16> to vector<64x64xbf16>
    %cst_63 = arith.constant dense<0.000000e+00> : vector<48x64xf32>
    %80 = tpu.matmul %77, %79, %cst_63 {dimension_numbers = #tpu.dot_dimension_numbers<[1], [0], [0], [1], [0, 0, 1, 1], [], []>} : vector<48x64xbf16>, vector<64x64xbf16>, vector<48x64xf32> -> vector<48x64xf32>
    %81 = arith.addf %75, %80 : vector<48x64xf32>
    %82 = vector.broadcast %12 : vector<48x1xf32> to vector<48x64xf32>
    %83 = arith.mulf %81, %82 : vector<48x64xf32>
    %cst_64 = arith.constant dense<0.000000e+00> : vector<64xf32>
    %84 = vector.multi_reduction <add>, %83, %cst_64 [0] : vector<48x64xf32> to vector<64xf32>
    %85 = vector.shape_cast %84 : vector<64xf32> to vector<1x64xf32>
    %86 = arith.mulf %83, %81 : vector<48x64xf32>
    %cst_65 = arith.constant dense<0.000000e+00> : vector<64xf32>
    %87 = vector.multi_reduction <add>, %86, %cst_65 [0] : vector<48x64xf32> to vector<64xf32>
    %88 = vector.shape_cast %87 : vector<64xf32> to vector<1x64xf32>
    %c0_66 = arith.constant 0 : index
    %c0_67 = arith.constant 0 : index
    %89 = vector.load %arg12[%c0_66, %c0_67] : memref<64x8xf32, #tpu.memory_space<vmem>>, vector<64x8xf32>
    %cst_68 = arith.constant dense<0.000000e+00> : vector<1x8xf32>
    %90 = tpu.matmul %85, %89, %cst_68 {dimension_numbers = #tpu.dot_dimension_numbers<[1], [0], [0], [1], [0, 0, 1, 1], [], []>} : vector<1x64xf32>, vector<64x8xf32>, vector<1x8xf32> -> vector<1x8xf32>
    %c0_69 = arith.constant 0 : index
    %c0_70 = arith.constant 0 : index
    %91 = vector.load %arg13[%c0_69, %c0_70] : memref<8x64xf32, #tpu.memory_space<vmem>>, vector<8x64xf32>
    %cst_71 = arith.constant dense<0.000000e+00> : vector<1x64xf32>
    %92 = tpu.matmul %90, %91, %cst_71 {dimension_numbers = #tpu.dot_dimension_numbers<[1], [0], [0], [1], [0, 0, 1, 1], [], []>} : vector<1x8xf32>, vector<8x64xf32>, vector<1x64xf32> -> vector<1x64xf32>
    %c0_72 = arith.constant 0 : index
    %c0_73 = arith.constant 0 : index
    %93 = vector.load %arg12[%c0_72, %c0_73] : memref<64x8xf32, #tpu.memory_space<vmem>>, vector<64x8xf32>
    %cst_74 = arith.constant dense<0.000000e+00> : vector<1x8xf32>
    %94 = tpu.matmul %88, %93, %cst_74 {dimension_numbers = #tpu.dot_dimension_numbers<[1], [0], [0], [1], [0, 0, 1, 1], [], []>} : vector<1x64xf32>, vector<64x8xf32>, vector<1x8xf32> -> vector<1x8xf32>
    %c0_75 = arith.constant 0 : index
    %c0_76 = arith.constant 0 : index
    %95 = vector.load %arg13[%c0_75, %c0_76] : memref<8x64xf32, #tpu.memory_space<vmem>>, vector<8x64xf32>
    %cst_77 = arith.constant dense<0.000000e+00> : vector<1x64xf32>
    %96 = tpu.matmul %94, %95, %cst_77 {dimension_numbers = #tpu.dot_dimension_numbers<[1], [0], [0], [1], [0, 0, 1, 1], [], []>} : vector<1x8xf32>, vector<8x64xf32>, vector<1x64xf32> -> vector<1x64xf32>
    %97 = arith.mulf %92, %92 : vector<1x64xf32>
    %98 = arith.subf %96, %97 : vector<1x64xf32>
    %c0_78 = arith.constant 0 : index
    %c0_79 = arith.constant 0 : index
    %99 = vector.load %arg8[%c0_78, %c0_79] : memref<1x64xf32, #tpu.memory_space<vmem>>, vector<1x64xf32>
    %cst_80 = arith.constant 9.99999974E-6 : f32
    %100 = vector.broadcast %cst_80 : f32 to vector<1x64xf32>
    %101 = arith.addf %98, %100 : vector<1x64xf32>
    %102 = math.rsqrt %101 : vector<1x64xf32>
    %103 = arith.mulf %99, %102 : vector<1x64xf32>
    %c0_81 = arith.constant 0 : index
    %c0_82 = arith.constant 0 : index
    %104 = vector.load %arg9[%c0_81, %c0_82] : memref<1x64xf32, #tpu.memory_space<vmem>>, vector<1x64xf32>
    %105 = arith.mulf %92, %103 : vector<1x64xf32>
    %106 = arith.subf %104, %105 : vector<1x64xf32>
    %107 = vector.broadcast %103 : vector<1x64xf32> to vector<48x64xf32>
    %108 = arith.mulf %81, %107 : vector<48x64xf32>
    %109 = vector.broadcast %106 : vector<1x64xf32> to vector<48x64xf32>
    %110 = arith.addf %108, %109 : vector<48x64xf32>
    %cst_83 = arith.constant 0.000000e+00 : f32
    %111 = vector.broadcast %cst_83 : f32 to vector<48x64xf32>
    %112 = arith.maximumf %110, %111 : vector<48x64xf32>
    %113 = vector.extract_strided_slice %112 {offsets = [0, 0], sizes = [16, 64], strides = [1, 1]} : vector<48x64xf32> to vector<16x64xf32>
    %c0_84 = arith.constant 0 : index
    %c0_85 = arith.constant 0 : index
    %114 = vector.load %arg15[%c0_84, %c0_85] : memref<16x128xf32, #tpu.memory_space<vmem>>, vector<16x64xf32>
    tpu.vector_store %arg15[%c0_84, %c0_85], %113 {strides = array<i32>} : memref<16x128xf32, #tpu.memory_space<vmem>>, vector<16x64xf32>,
    %115 = vector.extract_strided_slice %112 {offsets = [24, 0], sizes = [16, 64], strides = [1, 1]} : vector<48x64xf32> to vector<16x64xf32>
    %c0_86 = arith.constant 0 : index
    %c64_87 = arith.constant 64 : index
    %116 = vector.load %arg15[%c0_86, %c64_87] : memref<16x128xf32, #tpu.memory_space<vmem>>, vector<16x64xf32>
    tpu.vector_store %arg15[%c0_86, %c64_87], %115 {strides = array<i32>} : memref<16x128xf32, #tpu.memory_space<vmem>>, vector<16x64xf32>,
    return
  }
  func.func @transform_0(%arg0: i32) -> (i32, i32) {
    %c0_i32 = arith.constant 0 : i32
    %c0_i32_0 = arith.constant 0 : i32
    %c0_i32_1 = arith.constant 0 : i32
    return %c0_i32, %c0_i32_0 : i32, i32
  }
  func.func @transform_1(%arg0: i32) -> (i32, i32, i32) {
    %c0_i32 = arith.constant 0 : i32
    %c0_i32_0 = arith.constant 0 : i32
    %c0_i32_1 = arith.constant 0 : i32
    %c0_i32_2 = arith.constant 0 : i32
    return %c0_i32, %c0_i32_0, %c0_i32_1 : i32, i32, i32
  }
  func.func @transform_2(%arg0: i32) -> (i32, i32) {
    %c0_i32 = arith.constant 0 : i32
    %c0_i32_0 = arith.constant 0 : i32
    %c0_i32_1 = arith.constant 0 : i32
    return %c0_i32, %c0_i32_0 : i32, i32
  }
  func.func @transform_3(%arg0: i32) -> (i32, i32, i32) {
    %c0_i32 = arith.constant 0 : i32
    %c0_i32_0 = arith.constant 0 : i32
    %c0_i32_1 = arith.constant 0 : i32
    %c0_i32_2 = arith.constant 0 : i32
    return %c0_i32, %c0_i32_0, %c0_i32_1 : i32, i32, i32
  }
  func.func @transform_4(%arg0: i32) -> (i32, i32, i32) {
    %c0_i32 = arith.constant 0 : i32
    %c0_i32_0 = arith.constant 0 : i32
    %c0_i32_1 = arith.constant 0 : i32
    %c0_i32_2 = arith.constant 0 : i32
    return %c0_i32, %c0_i32_0, %c0_i32_1 : i32, i32, i32
  }
  func.func @transform_5(%arg0: i32) -> (i32, i32) {
    %c0_i32 = arith.constant 0 : i32
    %c0_i32_0 = arith.constant 0 : i32
    %c0_i32_1 = arith.constant 0 : i32
    return %c0_i32, %c0_i32_0 : i32, i32
  }
  func.func @transform_6(%arg0: i32) -> (i32, i32) {
    %c0_i32 = arith.constant 0 : i32
    %c0_i32_0 = arith.constant 0 : i32
    %c0_i32_1 = arith.constant 0 : i32
    return %c0_i32, %c0_i32_0 : i32, i32
  }
  func.func @transform_7(%arg0: i32) -> (i32, i32) {
    %c0_i32 = arith.constant 0 : i32
    %c0_i32_0 = arith.constant 0 : i32
    %c0_i32_1 = arith.constant 0 : i32
    return %c0_i32, %c0_i32_0 : i32, i32
  }
  func.func @transform_8(%arg0: i32) -> (i32, i32) {
    %c0_i32 = arith.constant 0 : i32
    %c0_i32_0 = arith.constant 0 : i32
    %c0_i32_1 = arith.constant 0 : i32
    return %c0_i32, %c0_i32_0 : i32, i32
  }
  func.func @transform_9(%arg0: i32) -> (i32, i32) {
    %c0_i32 = arith.constant 0 : i32
    %c0_i32_0 = arith.constant 0 : i32
    %c0_i32_1 = arith.constant 0 : i32
    return %c0_i32, %c0_i32_0 : i32, i32
  }
  func.func @transform_10(%arg0: i32) -> (i32, i32) {
    %c0_i32 = arith.constant 0 : i32
    %c0_i32_0 = arith.constant 0 : i32
    %c0_i32_1 = arith.constant 0 : i32
    return %c0_i32, %c0_i32_0 : i32, i32
  }
  func.func @transform_11(%arg0: i32) -> (i32, i32) {
    %c0_i32 = arith.constant 0 : i32
    %c0_i32_0 = arith.constant 0 : i32
    %c0_i32_1 = arith.constant 0 : i32
    return %c0_i32, %c0_i32_0 : i32, i32
  }
  func.func @transform_12(%arg0: i32) -> (i32, i32) {
    %c0_i32 = arith.constant 0 : i32
    %c0_i32_0 = arith.constant 0 : i32
    %c0_i32_1 = arith.constant 0 : i32
    return %c0_i32, %c0_i32_0 : i32, i32
  }
  func.func @transform_13(%arg0: i32) -> (i32, i32) {
    %c0_i32 = arith.constant 0 : i32
    %c0_i32_0 = arith.constant 0 : i32
    %c0_i32_1 = arith.constant 0 : i32
    return %c0_i32, %c0_i32_0 : i32, i32
  }
  func.func @transform_14(%arg0: i32) -> (i32, i32) {
    %c0_i32 = arith.constant 0 : i32
    %c0_i32_0 = arith.constant 0 : i32
    %c0_i32_1 = arith.constant 0 : i32
    return %c0_i32, %c0_i32_0 : i32, i32
  }
}

</mosaic_0001>

<llo_original>
// kernel: up_forward.1
$region0: #{up_forward.1}
  #allocation0 [shape = 'u32[]', space=smem, size = 0x4, offset = 0x4, fixed_abs, tag = 'smem constant byte address 0x4 - core index']
  #allocation1 [shape = 'u32[144,128]{1,0:T(1,128)}', space=vmem, size = 0x12000, scoped, tag = 'internal scratch']
  #allocation2 [shape = 'f32[48,96]{1,0:T(8,128)}', space=vmem, size = 0x6000, scoped, tag = 'scratch operand']
  %s0 = inlined_call_operand.vmem [shape: f32[48,64], index: 0, kind: input, shape index: {}]
  %s1 = inlined_call_operand.vmem [shape: f32[2,8,32], index: 1, kind: input, shape index: {}]
  %s2 = inlined_call_operand.vmem [shape: f32[24,8], index: 2, kind: input, shape index: {}]
  %s3 = inlined_call_operand.vmem [shape: bf16[3,96,64], index: 3, kind: input, shape index: {}]
  %s4 = inlined_call_operand.vmem [shape: bf16[3,64,64], index: 4, kind: input, shape index: {}]
  %s5 = inlined_call_operand.vmem [shape: f32[1,64], index: 5, kind: input, shape index: {}]
  %s6 = inlined_call_operand.vmem [shape: f32[1,64], index: 6, kind: input, shape index: {}]
  %s7 = inlined_call_operand.vmem [shape: f32[1,64], index: 7, kind: input, shape index: {}]
  %s8 = inlined_call_operand.vmem [shape: f32[1,64], index: 8, kind: input, shape index: {}]
  %s9 = inlined_call_operand.vmem [shape: f32[64,8], index: 9, kind: input, shape index: {}]
  %s10 = inlined_call_operand.vmem [shape: f32[8,64], index: 10, kind: input, shape index: {}]
  %s11 = inlined_call_operand.vmem [shape: f32[64,8], index: 11, kind: input, shape index: {}]
  %s12 = inlined_call_operand.vmem [shape: f32[8,64], index: 12, kind: input, shape index: {}]
  %s13 = inlined_call_operand.vmem [shape: f32[48,1], index: 13, kind: input, shape index: {}]
  %s14 = inlined_call_operand.vmem [shape: f32[16,128], index: 14, kind: output, shape index: {}]
  %s15 = sld [smem:[#allocation0]]
  $region66: #{up_forward.1} parent=0
    _
  %s17 = ssub.s32 1, %s15
  %s18 = scalar_select 0, %s17, %s15
  // Predicated region
  $region2: #{up_forward.1} parent=0 // pred_check
    _
  $region3: #{up_forward.1} parent=0 // pred_check_branch
    %20 = sbr.rel (0) target = $region5
  $region4: #{up_forward.1} parent=0 // pred_region
    _
  $region5: #{up_forward.1} parent=0 // pred_fallthru
    _
  // Predicated region
  $region6: #{up_forward.1} parent=0 // pred_check
    _
  $region7: #{up_forward.1} parent=0 // pred_check_branch
    %22 = sbr.rel (0) target = $region9
  $region8: #{up_forward.1} parent=0 // pred_region
    _
  $region9: #{up_forward.1} parent=0 // pred_fallthru
    _
  // Predicated region
  $region10: #{up_forward.1} parent=0 // pred_check
    _
  $region11: #{up_forward.1} parent=0 // pred_check_branch
    %24 = sbr.rel (0) target = $region13
  $region12: #{up_forward.1} parent=0 // pred_region
    _
  $region13: #{up_forward.1} parent=0 // pred_fallthru
    _
  // Predicated region
  $region14: #{up_forward.1} parent=0 // pred_check
    _
  $region15: #{up_forward.1} parent=0 // pred_check_branch
    %26 = sbr.rel (0) target = $region17
  $region16: #{up_forward.1} parent=0 // pred_region
    _
  $region17: #{up_forward.1} parent=0 // pred_fallthru
    _
  // Predicated region
  $region18: #{up_forward.1} parent=0 // pred_check
    _
  $region19: #{up_forward.1} parent=0 // pred_check_branch
    %28 = sbr.rel (0) target = $region21
  $region20: #{up_forward.1} parent=0 // pred_region
    _
  $region21: #{up_forward.1} parent=0 // pred_fallthru
    _
  // Predicated region
  $region22: #{up_forward.1} parent=0 // pred_check
    _
  $region23: #{up_forward.1} parent=0 // pred_check_branch
    %30 = sbr.rel (0) target = $region25
  $region24: #{up_forward.1} parent=0 // pred_region
    _
  $region25: #{up_forward.1} parent=0 // pred_fallthru
    _
  // Predicated region
  $region26: #{up_forward.1} parent=0 // pred_check
    _
  $region27: #{up_forward.1} parent=0 // pred_check_branch
    %32 = sbr.rel (0) target = $region29
  $region28: #{up_forward.1} parent=0 // pred_region
    _
  $region29: #{up_forward.1} parent=0 // pred_fallthru
    _
  // Predicated region
  $region30: #{up_forward.1} parent=0 // pred_check
    _
  $region31: #{up_forward.1} parent=0 // pred_check_branch
    %34 = sbr.rel (0) target = $region33
  $region32: #{up_forward.1} parent=0 // pred_region
    _
  $region33: #{up_forward.1} parent=0 // pred_fallthru
    _
  // Predicated region
  $region34: #{up_forward.1} parent=0 // pred_check
    _
  $region35: #{up_forward.1} parent=0 // pred_check_branch
    %36 = sbr.rel (0) target = $region37
  $region36: #{up_forward.1} parent=0 // pred_region
    _
  $region37: #{up_forward.1} parent=0 // pred_fallthru
    _
  // Predicated region
  $region38: #{up_forward.1} parent=0 // pred_check
    _
  $region39: #{up_forward.1} parent=0 // pred_check_branch
    %38 = sbr.rel (0) target = $region41
  $region40: #{up_forward.1} parent=0 // pred_region
    _
  $region41: #{up_forward.1} parent=0 // pred_fallthru
    _
  // Predicated region
  $region42: #{up_forward.1} parent=0 // pred_check
    _
  $region43: #{up_forward.1} parent=0 // pred_check_branch
    %40 = sbr.rel (0) target = $region45
  $region44: #{up_forward.1} parent=0 // pred_region
    _
  $region45: #{up_forward.1} parent=0 // pred_fallthru
    _
  // Predicated region
  $region46: #{up_forward.1} parent=0 // pred_check
    _
  $region47: #{up_forward.1} parent=0 // pred_check_branch
    %42 = sbr.rel (0) target = $region49
  $region48: #{up_forward.1} parent=0 // pred_region
    _
  $region49: #{up_forward.1} parent=0 // pred_fallthru
    _
  // Predicated region
  $region50: #{up_forward.1} parent=0 // pred_check
    _
  $region51: #{up_forward.1} parent=0 // pred_check_branch
    %44 = sbr.rel (0) target = $region53
  $region52: #{up_forward.1} parent=0 // pred_region
    _
  $region53: #{up_forward.1} parent=0 // pred_fallthru
    _
  // Predicated region
  $region54: #{up_forward.1} parent=0 // pred_check
    _
  $region55: #{up_forward.1} parent=0 // pred_check_branch
    %46 = sbr.rel (0) target = $region57
  $region56: #{up_forward.1} parent=0 // pred_region
    _
  $region57: #{up_forward.1} parent=0 // pred_fallthru
    _
  %v48 = vld [vmem:[%s0] sm:$0xff]
  %v49 = vld [vmem:[%s0 + $0x8] sm:$0xff]
  %v50 = vld [vmem:[%s0 + $0x10] sm:$0xff]
  %v51 = vld [vmem:[%s0 + $0x18] sm:$0xff]
  %v52 = vld [vmem:[%s0 + $0x20] sm:$0xff]
  %v53 = vld [vmem:[%s0 + $0x28] sm:$0xff]
  %vm54 = vcmask 523264
  %55 = vst.msk [vmem:[#allocation2] sm:$0xff] %vm54, %v48
  %56 = vst.msk [vmem:[#allocation2 + $0x8] sm:$0xff] %vm54, %v49
  %57 = vst.msk [vmem:[#allocation2 + $0x10] sm:$0xff] %vm54, %v50
  %58 = vst.msk [vmem:[#allocation2 + $0x18] sm:$0xff] %vm54, %v51
  %59 = vst.msk [vmem:[#allocation2 + $0x20] sm:$0xff] %vm54, %v52
  %60 = vst.msk [vmem:[#allocation2 + $0x28] sm:$0xff] %vm54, %v53
  %v61 = vld [vmem:[%s2] sm:$0xff]
  %v62 = vld [vmem:[%s2 + $0x8] sm:$0xff]
  %v63 = vld [vmem:[%s2 + $0x10] sm:$0xff]
  %v64 = vld [vmem:[%s1] sm:$0xff]
  %vm65 = vcmask 64512
  %v67 = vsel %vm65, %v61, 0
  %v70 = vsel %vm65, %v62, 0
  %v73 = vsel %vm65, %v63, 0
  %75 = vmatprep.subr.mxu0 0.0
  %76 = vmatpush1.msra.mxu0 %v64
  %77 = vmatprep.subr.mxu0 0.0
  %78 = vmatpush1.msra.mxu0 0.0
  %79 = vmatprep.subr.mxu0 0.0
  %80 = vmatpush1.msra.mxu0 0.0
  %81 = vmatprep.subr.mxu0 0.0
  %82 = vmatpush1.msra.mxu0 0.0
  %83 = vmatprep.subr.mxu0 0.0
  %84 = vmatpush1.msra.mxu0 0.0
  %85 = vmatprep.subr.mxu0 0.0
  %86 = vmatpush1.msra.mxu0 0.0
  %87 = vmatprep.subr.mxu0 0.0
  %88 = vmatpush1.msra.mxu0 0.0
  %89 = vmatprep.subr.mxu0 0.0
  %90 = vmatpush1.msra.mxu0 0.0
  %91 = vmatprep.subr.mxu0 0.0
  %92 = vmatpush1.msra.mxu0 0.0
  %93 = vmatprep.subr.mxu0 0.0
  %94 = vmatpush1.msra.mxu0 0.0
  %95 = vmatprep.subr.mxu0 0.0
  %96 = vmatpush1.msra.mxu0 0.0
  %97 = vmatprep.subr.mxu0 0.0
  %98 = vmatpush1.msra.mxu0 0.0
  %99 = vmatprep.subr.mxu0 0.0
  %100 = vmatpush1.msra.mxu0 0.0
  %101 = vmatprep.subr.mxu0 0.0
  %102 = vmatpush1.msra.mxu0 0.0
  %103 = vmatprep.subr.mxu0 0.0
  %104 = vmatpush1.msra.mxu0 0.0
  %105 = vmatprep.subr.mxu0 0.0
  %106 = vmatpush1.msra.mxu0 0.0
  %107 = vmatprep.subr.mxu0 0.0
  %108 = vmatpush1.msra.mxu0 0.0
  %109 = vmatprep.subr.mxu0 0.0
  %110 = vmatpush1.msra.mxu0 0.0
  %111 = vmatprep.subr.mxu0 0.0
  %112 = vmatpush1.msra.mxu0 0.0
  %113 = vmatprep.subr.mxu0 0.0
  %114 = vmatpush1.msra.mxu0 0.0
  %115 = vmatprep.subr.mxu0 0.0
  %116 = vmatpush1.msra.mxu0 0.0
  %117 = vmatprep.subr.mxu0 0.0
  %118 = vmatpush1.msra.mxu0 0.0
  %119 = vmatprep.subr.mxu0 0.0
  %120 = vmatpush1.msra.mxu0 0.0
  %121 = vmatprep.subr.mxu0 0.0
  %122 = vmatpush1.msra.mxu0 0.0
  %123 = vmatprep.subr.mxu0 0.0
  %124 = vmatpush1.msra.mxu0 0.0
  %125 = vmatprep.subr.mxu0 0.0
  %126 = vmatpush1.msra.mxu0 0.0
  %127 = vmatprep.subr.mxu0 0.0
  %128 = vmatpush1.msra.mxu0 0.0
  %129 = vmatprep.subr.mxu0 0.0
  %130 = vmatpush1.msra.mxu0 0.0
  %131 = vmatprep.subr.mxu0 0.0
  %132 = vmatpush1.msra.mxu0 0.0
  %133 = vmatprep.subr.mxu0 0.0
  %134 = vmatpush1.msra.mxu0 0.0
  %135 = vmatprep.subr.mxu0 0.0
  %136 = vmatpush1.msra.mxu0 0.0
  %137 = vmatprep.subr.mxu0 0.0
  %138 = vmatpush1.msra.mxu0 0.0
  %139 = vmatprep.mubr.f32.mxu0 0.0
  %140 = vmatmul.mubr.f32.gmra.mrb[0].mxu0 %v67
  %v141 = vpop.f32.mrb[0].mxu0
  %v142 = vadd.f32 0.0, %v141
  %v143 = vpop.f32.mrb[0].mxu0
  %144 = vmatprep.mubr.f32.mxu0 0.0
  %145 = vmatmul.mubr.f32.gmra.mrb[0].mxu0 %v70
  %v146 = vpop.f32.mrb[0].mxu0
  %v147 = vadd.f32 0.0, %v146
  %v148 = vpop.f32.mrb[0].mxu0
  %149 = vmatprep.mubr.f32.mxu0 0.0
  %150 = vmatmul.mubr.f32.gmra.mrb[0].mxu0 %v73
  %v151 = vpop.f32.mrb[0].mxu0
  %v152 = vadd.f32 0.0, %v151
  %v153 = vpop.f32.mrb[0].mxu0
  %154 = vdwg.mxu0
  %158 = vrot.lane.b32.xlu0 %v142, 64
  %v159 = vpop.permute.xlu0 %158
  %160 = vrot.lane.b32.xlu0 %v147, 64
  %v161 = vpop.permute.xlu0 %160
  %162 = vrot.lane.b32.xlu0 %v152, 64
  %v163 = vpop.permute.xlu0 %162
  %vm167 = vcmask 785920
  %168 = vst.msk [vmem:[#allocation2] sm:$0xff] %vm167, %v159
  %169 = vst.msk [vmem:[#allocation2 + $0x8] sm:$0xff] %vm167, %v161
  %170 = vst.msk [vmem:[#allocation2 + $0x10] sm:$0xff] %vm167, %v163
  %s171 = scalar_lea.vmem %s1, 8
  %v172 = vld [vmem:[%s171] sm:$0xff]
  %173 = vmatprep.subr.mxu0 0.0
  %174 = vmatpush1.msra.mxu0 %v172
  %175 = vmatprep.subr.mxu0 0.0
  %176 = vmatpush1.msra.mxu0 0.0
  %177 = vmatprep.subr.mxu0 0.0
  %178 = vmatpush1.msra.mxu0 0.0
  %179 = vmatprep.subr.mxu0 0.0
  %180 = vmatpush1.msra.mxu0 0.0
  %181 = vmatprep.subr.mxu0 0.0
  %182 = vmatpush1.msra.mxu0 0.0
  %183 = vmatprep.subr.mxu0 0.0
  %184 = vmatpush1.msra.mxu0 0.0
  %185 = vmatprep.subr.mxu0 0.0
  %186 = vmatpush1.msra.mxu0 0.0
  %187 = vmatprep.subr.mxu0 0.0
  %188 = vmatpush1.msra.mxu0 0.0
  %189 = vmatprep.subr.mxu0 0.0
  %190 = vmatpush1.msra.mxu0 0.0
  %191 = vmatprep.subr.mxu0 0.0
  %192 = vmatpush1.msra.mxu0 0.0
  %193 = vmatprep.subr.mxu0 0.0
  %194 = vmatpush1.msra.mxu0 0.0
  %195 = vmatprep.subr.mxu0 0.0
  %196 = vmatpush1.msra.mxu0 0.0
  %197 = vmatprep.subr.mxu0 0.0
  %198 = vmatpush1.msra.mxu0 0.0
  %199 = vmatprep.subr.mxu0 0.0
  %200 = vmatpush1.msra.mxu0 0.0
  %201 = vmatprep.subr.mxu0 0.0
  %202 = vmatpush1.msra.mxu0 0.0
  %203 = vmatprep.subr.mxu0 0.0
  %204 = vmatpush1.msra.mxu0 0.0
  %205 = vmatprep.subr.mxu0 0.0
  %206 = vmatpush1.msra.mxu0 0.0
  %207 = vmatprep.subr.mxu0 0.0
  %208 = vmatpush1.msra.mxu0 0.0
  %209 = vmatprep.subr.mxu0 0.0
  %210 = vmatpush1.msra.mxu0 0.0
  %211 = vmatprep.subr.mxu0 0.0
  %212 = vmatpush1.msra.mxu0 0.0
  %213 = vmatprep.subr.mxu0 0.0
  %214 = vmatpush1.msra.mxu0 0.0
  %215 = vmatprep.subr.mxu0 0.0
  %216 = vmatpush1.msra.mxu0 0.0
  %217 = vmatprep.subr.mxu0 0.0
  %218 = vmatpush1.msra.mxu0 0.0
  %219 = vmatprep.subr.mxu0 0.0
  %220 = vmatpush1.msra.mxu0 0.0
  %221 = vmatprep.subr.mxu0 0.0
  %222 = vmatpush1.msra.mxu0 0.0
  %223 = vmatprep.subr.mxu0 0.0
  %224 = vmatpush1.msra.mxu0 0.0
  %225 = vmatprep.subr.mxu0 0.0
  %226 = vmatpush1.msra.mxu0 0.0
  %227 = vmatprep.subr.mxu0 0.0
  %228 = vmatpush1.msra.mxu0 0.0
  %229 = vmatprep.subr.mxu0 0.0
  %230 = vmatpush1.msra.mxu0 0.0
  %231 = vmatprep.subr.mxu0 0.0
  %232 = vmatpush1.msra.mxu0 0.0
  %233 = vmatprep.subr.mxu0 0.0
  %234 = vmatpush1.msra.mxu0 0.0
  %235 = vmatprep.subr.mxu0 0.0
  %236 = vmatpush1.msra.mxu0 0.0
  %237 = vmatprep.mubr.f32.mxu0 0.0
  %238 = vmatmul.mubr.f32.gmra.mrb[0].mxu0 %v67
  %v239 = vpop.f32.mrb[0].mxu0
  %v240 = vadd.f32 0.0, %v239
  %v241 = vpop.f32.mrb[0].mxu0
  %242 = vmatprep.mubr.f32.mxu0 0.0
  %243 = vmatmul.mubr.f32.gmra.mrb[0].mxu0 %v70
  %v244 = vpop.f32.mrb[0].mxu0
  %v245 = vadd.f32 0.0, %v244
  %v246 = vpop.f32.mrb[0].mxu0
  %247 = vmatprep.mubr.f32.mxu0 0.0
  %248 = vmatmul.mubr.f32.gmra.mrb[0].mxu0 %v73
  %v249 = vpop.f32.mrb[0].mxu0
  %v250 = vadd.f32 0.0, %v249
  %v251 = vpop.f32.mrb[0].mxu0
  %252 = vdwg.mxu0
  %256 = vrot.lane.b32.xlu0 %v240, 64
  %v257 = vpop.permute.xlu0 %256
  %258 = vrot.lane.b32.xlu0 %v245, 64
  %v259 = vpop.permute.xlu0 %258
  %260 = vrot.lane.b32.xlu0 %v250, 64
  %v261 = vpop.permute.xlu0 %260
  %265 = vst.msk [vmem:[#allocation2 + $0x18] sm:$0xff] %vm167, %v257
  %266 = vst.msk [vmem:[#allocation2 + $0x20] sm:$0xff] %vm167, %v259
  %267 = vst.msk [vmem:[#allocation2 + $0x28] sm:$0xff] %vm167, %v261
  %v268 = vld [vmem:[#allocation2] sm:$0xff]
  %v269 = vld [vmem:[#allocation2 + $0x8] sm:$0xff]
  %v270 = vld [vmem:[#allocation2 + $0x10] sm:$0xff]
  %v271 = vld [vmem:[#allocation2 + $0x18] sm:$0xff]
  %v272 = vld [vmem:[#allocation2 + $0x20] sm:$0xff]
  %v273 = vld [vmem:[#allocation2 + $0x28] sm:$0xff]
  %v274 = vld [vmem:[%s13] sm:$0xff]
  %v275 = vld [vmem:[%s13 + $0x8] sm:$0xff]
  %v276 = vld [vmem:[%s13 + $0x10] sm:$0xff]
  %v277 = vld [vmem:[%s13 + $0x18] sm:$0xff]
  %v278 = vld [vmem:[%s13 + $0x20] sm:$0xff]
  %v279 = vld [vmem:[%s13 + $0x28] sm:$0xff]
  %v280 = vrot.slane %v268, 7
  %v281 = vrot.slane %v269, 7
  %v282 = vrot.slane %v270, 7
  %v283 = vrot.slane %v271, 7
  %v284 = vrot.slane %v272, 7
  %v285 = vrot.slane %v273, 7
  %v286 = vlaneseq
  %v287 = vshrl.u32 %v286, 7
  %vm288 = vcmp.lt.s32.totalorder %v287, 1
  %v289 = vsel %vm288, %v284, %v285
  %v290 = vsel %vm288, %v283, %v284
  %v291 = vsel %vm288, %v282, %v283
  %v292 = vsel %vm288, %v281, %v282
  %v293 = vsel %vm288, %v280, %v281
  %v294 = vsel %vm288, %v285, %v280
  %v295 = vpack.c.bf16 %v293, %v294
  %v296 = vpack.c.bf16 %v291, %v292
  %v297 = vpack.c.bf16 %v289, %v290
  %v298 = vld [vmem:[%s3] sm:$0xf]
  %v299 = vld [vmem:[%s3 + $0x4] sm:$0xf]
  %v300 = vld [vmem:[%s3 + $0x8] sm:$0xf]
  %v301 = vld [vmem:[%s3 + $0xc] sm:$0xf]
  %v302 = vld [vmem:[%s3 + $0x10] sm:$0xf]
  %v303 = vld [vmem:[%s3 + $0x14] sm:$0xf]
  %v304 = vld [vmem:[%s3 + $0x18] sm:$0xf]
  %v305 = vld [vmem:[%s3 + $0x1c] sm:$0xf]
  %v306 = vld [vmem:[%s3 + $0x20] sm:$0xf]
  %v307 = vld [vmem:[%s3 + $0x24] sm:$0xf]
  %v308 = vld [vmem:[%s3 + $0x28] sm:$0xf]
  %v309 = vld [vmem:[%s3 + $0x2c] sm:$0xf]
  %v310 = vpack.c.bf16 %v269, %v268
  %v311 = vpack.c.bf16 %v271, %v270
  %v312 = vpack.c.bf16 %v273, %v272
  %s313 = scalar_lea.vmem %s3, 48
  %v314 = vld [vmem:[%s313] sm:$0xf]
  %v315 = vld [vmem:[%s313 + $0x4] sm:$0xf]
  %v316 = vld [vmem:[%s313 + $0x8] sm:$0xf]
  %v317 = vld [vmem:[%s313 + $0xc] sm:$0xf]
  %v318 = vld [vmem:[%s313 + $0x10] sm:$0xf]
  %v319 = vld [vmem:[%s313 + $0x14] sm:$0xf]
  %v320 = vld [vmem:[%s313 + $0x18] sm:$0xf]
  %v321 = vld [vmem:[%s313 + $0x1c] sm:$0xf]
  %v322 = vld [vmem:[%s313 + $0x20] sm:$0xf]
  %v323 = vld [vmem:[%s313 + $0x24] sm:$0xf]
  %v324 = vld [vmem:[%s313 + $0x28] sm:$0xf]
  %v325 = vld [vmem:[%s313 + $0x2c] sm:$0xf]
  %v338 = vunpack.c.l.b16 %v314
  %v339 = vunpack.c.l.b16 %v315
  %v340 = vunpack.c.l.b16 %v316
  %v341 = vunpack.c.l.b16 %v317
  %v342 = vunpack.c.l.b16 %v318
  %v343 = vunpack.c.l.b16 %v319
  %v344 = vunpack.c.l.b16 %v320
  %v345 = vunpack.c.l.b16 %v321
  %v346 = vunpack.c.l.b16 %v322
  %v347 = vunpack.c.l.b16 %v323
  %v348 = vunpack.c.l.b16 %v324
  %v349 = vunpack.c.l.b16 %v325
  %v350 = vpack.c.b16 %v339, %v338
  %v351 = vpack.c.b16 %v341, %v340
  %v352 = vpack.c.b16 %v343, %v342
  %v353 = vpack.c.b16 %v345, %v344
  %v354 = vpack.c.b16 %v347, %v346
  %v355 = vpack.c.b16 %v349, %v348
  %vm362 = vcmask 785408
  %v364 = vsel %vm362, %v310, 0
  %v367 = vsel %vm362, %v311, 0
  %v370 = vsel %vm362, %v312, 0
  %372 = vmatprep.subr.bf16.mxu0 0
  %373 = vmatpush1.bf16.msra.mxu0 %v350
  %374 = vmatprep.subr.bf16.mxu0 0
  %375 = vmatpush1.bf16.msra.mxu0 %v351
  %376 = vmatprep.subr.bf16.mxu0 0
  %377 = vmatpush1.bf16.msra.mxu0 %v352
  %378 = vmatprep.subr.bf16.mxu0 0
  %379 = vmatpush1.bf16.msra.mxu0 %v353
  %380 = vmatprep.subr.bf16.mxu0 0
  %381 = vmatpush1.bf16.msra.mxu0 %v354
  %382 = vmatprep.subr.bf16.mxu0 0
  %383 = vmatpush1.bf16.msra.mxu0 %v355
  %384 = vmatprep.subr.bf16.mxu0 0
  %385 = vmatpush1.bf16.msra.mxu0 0
  %386 = vmatprep.subr.bf16.mxu0 0
  %387 = vmatpush1.bf16.msra.mxu0 0
  %388 = vmatprep.subr.bf16.mxu0 0
  %389 = vmatpush1.bf16.msra.mxu0 0
  %390 = vmatprep.subr.bf16.mxu0 0
  %391 = vmatpush1.bf16.msra.mxu0 0
  %392 = vmatprep.subr.bf16.mxu0 0
  %393 = vmatpush1.bf16.msra.mxu0 0
  %394 = vmatprep.subr.bf16.mxu0 0
  %395 = vmatpush1.bf16.msra.mxu0 0
  %396 = vmatprep.subr.bf16.mxu0 0
  %397 = vmatpush1.bf16.msra.mxu0 0
  %398 = vmatprep.subr.bf16.mxu0 0
  %399 = vmatpush1.bf16.msra.mxu0 0
  %400 = vmatprep.subr.bf16.mxu0 0
  %401 = vmatpush1.bf16.msra.mxu0 0
  %402 = vmatprep.subr.bf16.mxu0 0
  %403 = vmatpush1.bf16.msra.mxu0 0
  %404 = vmatprep.mubr.bf16.mxu0 0
  %405 = vmatmul.mubr.bf16.gmra.mrb[0].mxu0 %v364
  %v406 = vpop.f32.mrb[0].mxu0
  %v407 = vadd.f32 0.0, %v406
  %v408 = vpop.f32.mrb[0].mxu0
  %v409 = vpop.f32.mrb[0].mxu0
  %v410 = vadd.f32 0.0, %v409
  %v411 = vpop.f32.mrb[0].mxu0
  %412 = vmatprep.mubr.bf16.mxu0 0
  %413 = vmatmul.mubr.bf16.gmra.mrb[0].mxu0 %v367
  %v414 = vpop.f32.mrb[0].mxu0
  %v415 = vadd.f32 0.0, %v414
  %v416 = vpop.f32.mrb[0].mxu0
  %v417 = vpop.f32.mrb[0].mxu0
  %v418 = vadd.f32 0.0, %v417
  %v419 = vpop.f32.mrb[0].mxu0
  %420 = vmatprep.mubr.bf16.mxu0 0
  %421 = vmatmul.mubr.bf16.gmra.mrb[0].mxu0 %v370
  %v422 = vpop.f32.mrb[0].mxu0
  %v423 = vadd.f32 0.0, %v422
  %v424 = vpop.f32.mrb[0].mxu0
  %v425 = vpop.f32.mrb[0].mxu0
  %v426 = vadd.f32 0.0, %v425
  %v427 = vpop.f32.mrb[0].mxu0
  %428 = vdwg.mxu0
  %v441 = vunpack.c.l.b16 %v298
  %v442 = vunpack.c.l.b16 %v299
  %v443 = vunpack.c.l.b16 %v300
  %v444 = vunpack.c.l.b16 %v301
  %v445 = vunpack.c.l.b16 %v302
  %v446 = vunpack.c.l.b16 %v303
  %v447 = vunpack.c.l.b16 %v304
  %v448 = vunpack.c.l.b16 %v305
  %v449 = vunpack.c.l.b16 %v306
  %v450 = vunpack.c.l.b16 %v307
  %v451 = vunpack.c.l.b16 %v308
  %v452 = vunpack.c.l.b16 %v309
  %v453 = vpack.c.b16 %v442, %v441
  %v454 = vpack.c.b16 %v444, %v443
  %v455 = vpack.c.b16 %v446, %v445
  %v456 = vpack.c.b16 %v448, %v447
  %v457 = vpack.c.b16 %v450, %v449
  %v458 = vpack.c.b16 %v452, %v451
  %v466 = vsel %vm362, %v295, 0
  %v469 = vsel %vm362, %v296, 0
  %v472 = vsel %vm362, %v297, 0
  %474 = vmatprep.subr.bf16.mxu0 0
  %475 = vmatpush1.bf16.msra.mxu0 %v453
  %476 = vmatprep.subr.bf16.mxu0 0
  %477 = vmatpush1.bf16.msra.mxu0 %v454
  %478 = vmatprep.subr.bf16.mxu0 0
  %479 = vmatpush1.bf16.msra.mxu0 %v455
  %480 = vmatprep.subr.bf16.mxu0 0
  %481 = vmatpush1.bf16.msra.mxu0 %v456
  %482 = vmatprep.subr.bf16.mxu0 0
  %483 = vmatpush1.bf16.msra.mxu0 %v457
  %484 = vmatprep.subr.bf16.mxu0 0
  %485 = vmatpush1.bf16.msra.mxu0 %v458
  %486 = vmatprep.subr.bf16.mxu0 0
  %487 = vmatpush1.bf16.msra.mxu0 0
  %488 = vmatprep.subr.bf16.mxu0 0
  %489 = vmatpush1.bf16.msra.mxu0 0
  %490 = vmatprep.subr.bf16.mxu0 0
  %491 = vmatpush1.bf16.msra.mxu0 0
  %492 = vmatprep.subr.bf16.mxu0 0
  %493 = vmatpush1.bf16.msra.mxu0 0
  %494 = vmatprep.subr.bf16.mxu0 0
  %495 = vmatpush1.bf16.msra.mxu0 0
  %496 = vmatprep.subr.bf16.mxu0 0
  %497 = vmatpush1.bf16.msra.mxu0 0
  %498 = vmatprep.subr.bf16.mxu0 0
  %499 = vmatpush1.bf16.msra.mxu0 0
  %500 = vmatprep.subr.bf16.mxu0 0
  %501 = vmatpush1.bf16.msra.mxu0 0
  %502 = vmatprep.subr.bf16.mxu0 0
  %503 = vmatpush1.bf16.msra.mxu0 0
  %504 = vmatprep.subr.bf16.mxu0 0
  %505 = vmatpush1.bf16.msra.mxu0 0
  %506 = vmatprep.mubr.bf16.mxu0 0
  %507 = vmatmul.mubr.bf16.gmra.mrb[0].mxu0 %v466
  %v508 = vpop.f32.mrb[0].mxu0
  %v509 = vadd.f32 %v407, %v508
  %v510 = vpop.f32.mrb[0].mxu0
  %v511 = vpop.f32.mrb[0].mxu0
  %v512 = vadd.f32 %v410, %v511
  %v513 = vpop.f32.mrb[0].mxu0
  %514 = vmatprep.mubr.bf16.mxu0 0
  %515 = vmatmul.mubr.bf16.gmra.mrb[0].mxu0 %v469
  %v516 = vpop.f32.mrb[0].mxu0
  %v517 = vadd.f32 %v415, %v516
  %v518 = vpop.f32.mrb[0].mxu0
  %v519 = vpop.f32.mrb[0].mxu0
  %v520 = vadd.f32 %v418, %v519
  %v521 = vpop.f32.mrb[0].mxu0
  %522 = vmatprep.mubr.bf16.mxu0 0
  %523 = vmatmul.mubr.bf16.gmra.mrb[0].mxu0 %v472
  %v524 = vpop.f32.mrb[0].mxu0
  %v525 = vadd.f32 %v423, %v524
  %v526 = vpop.f32.mrb[0].mxu0
  %v527 = vpop.f32.mrb[0].mxu0
  %v528 = vadd.f32 %v426, %v527
  %v529 = vpop.f32.mrb[0].mxu0
  %530 = vdwg.mxu0
  %v531 = vrot.slane %v268, 1
  %v532 = vrot.slane %v269, 1
  %v533 = vrot.slane %v270, 1
  %v534 = vrot.slane %v271, 1
  %v535 = vrot.slane %v272, 1
  %v536 = vrot.slane %v273, 1
  %vm537 = vcmp.lt.s32.totalorder %v287, 7
  %v538 = vsel %vm537, %v535, %v536
  %v539 = vsel %vm537, %v534, %v535
  %v540 = vsel %vm537, %v533, %v534
  %v541 = vsel %vm537, %v532, %v533
  %v542 = vsel %vm537, %v531, %v532
  %v543 = vsel %vm537, %v536, %v531
  %v544 = vpack.c.bf16 %v541, %v542
  %v545 = vpack.c.bf16 %v539, %v540
  %v546 = vpack.c.bf16 %v543, %v538
  %s547 = scalar_lea.vmem %s3, 96
  %v548 = vld [vmem:[%s547] sm:$0xf]
  %v549 = vld [vmem:[%s547 + $0x4] sm:$0xf]
  %v550 = vld [vmem:[%s547 + $0x8] sm:$0xf]
  %v551 = vld [vmem:[%s547 + $0xc] sm:$0xf]
  %v552 = vld [vmem:[%s547 + $0x10] sm:$0xf]
  %v553 = vld [vmem:[%s547 + $0x14] sm:$0xf]
  %v554 = vld [vmem:[%s547 + $0x18] sm:$0xf]
  %v555 = vld [vmem:[%s547 + $0x1c] sm:$0xf]
  %v556 = vld [vmem:[%s547 + $0x20] sm:$0xf]
  %v557 = vld [vmem:[%s547 + $0x24] sm:$0xf]
  %v558 = vld [vmem:[%s547 + $0x28] sm:$0xf]
  %v559 = vld [vmem:[%s547 + $0x2c] sm:$0xf]
  %v572 = vunpack.c.l.b16 %v548
  %v573 = vunpack.c.l.b16 %v549
  %v574 = vunpack.c.l.b16 %v550
  %v575 = vunpack.c.l.b16 %v551
  %v576 = vunpack.c.l.b16 %v552
  %v577 = vunpack.c.l.b16 %v553
  %v578 = vunpack.c.l.b16 %v554
  %v579 = vunpack.c.l.b16 %v555
  %v580 = vunpack.c.l.b16 %v556
  %v581 = vunpack.c.l.b16 %v557
  %v582 = vunpack.c.l.b16 %v558
  %v583 = vunpack.c.l.b16 %v559
  %v584 = vpack.c.b16 %v573, %v572
  %v585 = vpack.c.b16 %v575, %v574
  %v586 = vpack.c.b16 %v577, %v576
  %v587 = vpack.c.b16 %v579, %v578
  %v588 = vpack.c.b16 %v581, %v580
  %v589 = vpack.c.b16 %v583, %v582
  %v597 = vsel %vm362, %v544, 0
  %v600 = vsel %vm362, %v545, 0
  %v603 = vsel %vm362, %v546, 0
  %605 = vmatprep.subr.bf16.mxu0 0
  %606 = vmatpush1.bf16.msra.mxu0 %v584
  %607 = vmatprep.subr.bf16.mxu0 0
  %608 = vmatpush1.bf16.msra.mxu0 %v585
  %609 = vmatprep.subr.bf16.mxu0 0
  %610 = vmatpush1.bf16.msra.mxu0 %v586
  %611 = vmatprep.subr.bf16.mxu0 0
  %612 = vmatpush1.bf16.msra.mxu0 %v587
  %613 = vmatprep.subr.bf16.mxu0 0
  %614 = vmatpush1.bf16.msra.mxu0 %v588
  %615 = vmatprep.subr.bf16.mxu0 0
  %616 = vmatpush1.bf16.msra.mxu0 %v589
  %617 = vmatprep.subr.bf16.mxu0 0
  %618 = vmatpush1.bf16.msra.mxu0 0
  %619 = vmatprep.subr.bf16.mxu0 0
  %620 = vmatpush1.bf16.msra.mxu0 0
  %621 = vmatprep.subr.bf16.mxu0 0
  %622 = vmatpush1.bf16.msra.mxu0 0
  %623 = vmatprep.subr.bf16.mxu0 0
  %624 = vmatpush1.bf16.msra.mxu0 0
  %625 = vmatprep.subr.bf16.mxu0 0
  %626 = vmatpush1.bf16.msra.mxu0 0
  %627 = vmatprep.subr.bf16.mxu0 0
  %628 = vmatpush1.bf16.msra.mxu0 0
  %629 = vmatprep.subr.bf16.mxu0 0
  %630 = vmatpush1.bf16.msra.mxu0 0
  %631 = vmatprep.subr.bf16.mxu0 0
  %632 = vmatpush1.bf16.msra.mxu0 0
  %633 = vmatprep.subr.bf16.mxu0 0
  %634 = vmatpush1.bf16.msra.mxu0 0
  %635 = vmatprep.subr.bf16.mxu0 0
  %636 = vmatpush1.bf16.msra.mxu0 0
  %637 = vmatprep.mubr.bf16.mxu0 0
  %638 = vmatmul.mubr.bf16.gmra.mrb[0].mxu0 %v597
  %v639 = vpop.f32.mrb[0].mxu0
  %v640 = vadd.f32 0.0, %v639
  %v641 = vpop.f32.mrb[0].mxu0
  %v642 = vpop.f32.mrb[0].mxu0
  %v643 = vadd.f32 0.0, %v642
  %v644 = vpop.f32.mrb[0].mxu0
  %645 = vmatprep.mubr.bf16.mxu0 0
  %646 = vmatmul.mubr.bf16.gmra.mrb[0].mxu0 %v600
  %v647 = vpop.f32.mrb[0].mxu0
  %v648 = vadd.f32 0.0, %v647
  %v649 = vpop.f32.mrb[0].mxu0
  %v650 = vpop.f32.mrb[0].mxu0
  %v651 = vadd.f32 0.0, %v650
  %v652 = vpop.f32.mrb[0].mxu0
  %653 = vmatprep.mubr.bf16.mxu0 0
  %654 = vmatmul.mubr.bf16.gmra.mrb[0].mxu0 %v603
  %v655 = vpop.f32.mrb[0].mxu0
  %v656 = vadd.f32 0.0, %v655
  %v657 = vpop.f32.mrb[0].mxu0
  %v658 = vpop.f32.mrb[0].mxu0
  %v659 = vadd.f32 0.0, %v658
  %v660 = vpop.f32.mrb[0].mxu0
  %661 = vdwg.mxu0
  %v662 = vadd.f32 %v509, %v640
  %v663 = vadd.f32 %v512, %v643
  %v664 = vadd.f32 %v517, %v648
  %v665 = vadd.f32 %v520, %v651
  %v666 = vadd.f32 %v525, %v656
  %v667 = vadd.f32 %v528, %v659
  %669 = vset.pattern.permute.xlu0 0
  %670 = vperm.xlu0 %669, %v274
  %v671 = vpop.permute.xlu0 %670
  %674 = vset.pattern.permute.xlu0 0
  %675 = vperm.xlu0 %674, %v275
  %v676 = vpop.permute.xlu0 %675
  %679 = vset.pattern.permute.xlu0 0
  %680 = vperm.xlu0 %679, %v276
  %v681 = vpop.permute.xlu0 %680
  %684 = vset.pattern.permute.xlu0 0
  %685 = vperm.xlu0 %684, %v277
  %v686 = vpop.permute.xlu0 %685
  %689 = vset.pattern.permute.xlu0 0
  %690 = vperm.xlu0 %689, %v278
  %v691 = vpop.permute.xlu0 %690
  %694 = vset.pattern.permute.xlu0 0
  %695 = vperm.xlu0 %694, %v279
  %v696 = vpop.permute.xlu0 %695
  %v698 = vmul.f32 %v662, %v671
  %v699 = vmul.f32 %v663, %v676
  %v700 = vmul.f32 %v664, %v681
  %v701 = vmul.f32 %v665, %v686
  %v702 = vmul.f32 %v666, %v691
  %v703 = vmul.f32 %v667, %v696
  %v704 = vsel %vm54, %v698, 0.0
  %v705 = vsel %vm54, %v699, 0.0
  %v706 = vadd.f32 %v704, %v705
  %v707 = vsel %vm54, %v700, 0.0
  %v708 = vadd.f32 %v706, %v707
  %v709 = vsel %vm54, %v701, 0.0
  %v710 = vadd.f32 %v708, %v709
  %v711 = vsel %vm54, %v702, 0.0
  %v712 = vadd.f32 %v710, %v711
  %v713 = vsel %vm54, %v703, 0.0
  %v714 = vadd.f32 %v712, %v713
  %v715 = vrot.slane %v714, 4
  %v716 = vadd.f32 %v714, %v715
  %v717 = vrot.slane %v716, 2
  %v718 = vadd.f32 %v716, %v717
  %v719 = vrot.slane %v718, 1
  %v720 = vadd.f32 %v718, %v719
  %v721 = vmul.f32 %v698, %v662
  %v722 = vmul.f32 %v699, %v663
  %v723 = vmul.f32 %v700, %v664
  %v724 = vmul.f32 %v701, %v665
  %v725 = vmul.f32 %v702, %v666
  %v726 = vmul.f32 %v703, %v667
  %v727 = vsel %vm54, %v721, 0.0
  %v728 = vsel %vm54, %v722, 0.0
  %v729 = vadd.f32 %v727, %v728
  %v730 = vsel %vm54, %v723, 0.0
  %v731 = vadd.f32 %v729, %v730
  %v732 = vsel %vm54, %v724, 0.0
  %v733 = vadd.f32 %v731, %v732
  %v734 = vsel %vm54, %v725, 0.0
  %v735 = vadd.f32 %v733, %v734
  %v736 = vsel %vm54, %v726, 0.0
  %v737 = vadd.f32 %v735, %v736
  %v738 = vrot.slane %v737, 4
  %v739 = vadd.f32 %v737, %v738
  %v740 = vrot.slane %v739, 2
  %v741 = vadd.f32 %v739, %v740
  %v742 = vrot.slane %v741, 1
  %v743 = vadd.f32 %v741, %v742
  %v744 = vld [vmem:[%s9] sm:$0xff]
  %v745 = vld [vmem:[%s9 + $0x8] sm:$0xff]
  %v746 = vld [vmem:[%s9 + $0x10] sm:$0xff]
  %v747 = vld [vmem:[%s9 + $0x18] sm:$0xff]
  %v748 = vld [vmem:[%s9 + $0x20] sm:$0xff]
  %v749 = vld [vmem:[%s9 + $0x28] sm:$0xff]
  %v750 = vld [vmem:[%s9 + $0x30] sm:$0xff]
  %v751 = vld [vmem:[%s9 + $0x38] sm:$0xff]
  %v753 = vsel %vm54, %v720, 0
  %755 = vmatprep.subr.mxu0 0.0
  %756 = vmatpush1.msra.mxu0 %v744
  %757 = vmatprep.subr.mxu0 0.0
  %758 = vmatpush1.msra.mxu0 %v745
  %759 = vmatprep.subr.mxu0 0.0
  %760 = vmatpush1.msra.mxu0 %v746
  %761 = vmatprep.subr.mxu0 0.0
  %762 = vmatpush1.msra.mxu0 %v747
  %763 = vmatprep.subr.mxu0 0.0
  %764 = vmatpush1.msra.mxu0 %v748
  %765 = vmatprep.subr.mxu0 0.0
  %766 = vmatpush1.msra.mxu0 %v749
  %767 = vmatprep.subr.mxu0 0.0
  %768 = vmatpush1.msra.mxu0 %v750
  %769 = vmatprep.subr.mxu0 0.0
  %770 = vmatpush1.msra.mxu0 %v751
  %771 = vmatprep.subr.mxu0 0.0
  %772 = vmatpush1.msra.mxu0 0.0
  %773 = vmatprep.subr.mxu0 0.0
  %774 = vmatpush1.msra.mxu0 0.0
  %775 = vmatprep.subr.mxu0 0.0
  %776 = vmatpush1.msra.mxu0 0.0
  %777 = vmatprep.subr.mxu0 0.0
  %778 = vmatpush1.msra.mxu0 0.0
  %779 = vmatprep.subr.mxu0 0.0
  %780 = vmatpush1.msra.mxu0 0.0
  %781 = vmatprep.subr.mxu0 0.0
  %782 = vmatpush1.msra.mxu0 0.0
  %783 = vmatprep.subr.mxu0 0.0
  %784 = vmatpush1.msra.mxu0 0.0
  %785 = vmatprep.subr.mxu0 0.0
  %786 = vmatpush1.msra.mxu0 0.0
  %787 = vmatprep.subr.mxu0 0.0
  %788 = vmatpush1.msra.mxu0 0.0
  %789 = vmatprep.subr.mxu0 0.0
  %790 = vmatpush1.msra.mxu0 0.0
  %791 = vmatprep.subr.mxu0 0.0
  %792 = vmatpush1.msra.mxu0 0.0
  %793 = vmatprep.subr.mxu0 0.0
  %794 = vmatpush1.msra.mxu0 0.0
  %795 = vmatprep.subr.mxu0 0.0
  %796 = vmatpush1.msra.mxu0 0.0
  %797 = vmatprep.subr.mxu0 0.0
  %798 = vmatpush1.msra.mxu0 0.0
  %799 = vmatprep.subr.mxu0 0.0
  %800 = vmatpush1.msra.mxu0 0.0
  %801 = vmatprep.subr.mxu0 0.0
  %802 = vmatpush1.msra.mxu0 0.0
  %803 = vmatprep.subr.mxu0 0.0
  %804 = vmatpush1.msra.mxu0 0.0
  %805 = vmatprep.subr.mxu0 0.0
  %806 = vmatpush1.msra.mxu0 0.0
  %807 = vmatprep.subr.mxu0 0.0
  %808 = vmatpush1.msra.mxu0 0.0
  %809 = vmatprep.subr.mxu0 0.0
  %810 = vmatpush1.msra.mxu0 0.0
  %811 = vmatprep.subr.mxu0 0.0
  %812 = vmatpush1.msra.mxu0 0.0
  %813 = vmatprep.subr.mxu0 0.0
  %814 = vmatpush1.msra.mxu0 0.0
  %815 = vmatprep.subr.mxu0 0.0
  %816 = vmatpush1.msra.mxu0 0.0
  %817 = vmatprep.subr.mxu0 0.0
  %818 = vmatpush1.msra.mxu0 0.0
  %819 = vmatprep.mubr.f32.mxu0 0.0
  %820 = vmatmul.mubr.f32.gmra.mrb[0].mxu0 %v753
  %v821 = vpop.f32.mrb[0].mxu0
  %v822 = vadd.f32 0.0, %v821
  %v823 = vpop.f32.mrb[0].mxu0
  %824 = vdwg.mxu0
  %v825 = vld [vmem:[%s10] sm:$0xff]
  %v827 = vsel %vm65, %v822, 0
  %829 = vmatprep.subr.mxu0 0.0
  %830 = vmatpush1.msra.mxu0 %v825
  %831 = vmatprep.subr.mxu0 0.0
  %832 = vmatpush1.msra.mxu0 0.0
  %833 = vmatprep.subr.mxu0 0.0
  %834 = vmatpush1.msra.mxu0 0.0
  %835 = vmatprep.subr.mxu0 0.0
  %836 = vmatpush1.msra.mxu0 0.0
  %837 = vmatprep.subr.mxu0 0.0
  %838 = vmatpush1.msra.mxu0 0.0
  %839 = vmatprep.subr.mxu0 0.0
  %840 = vmatpush1.msra.mxu0 0.0
  %841 = vmatprep.subr.mxu0 0.0
  %842 = vmatpush1.msra.mxu0 0.0
  %843 = vmatprep.subr.mxu0 0.0
  %844 = vmatpush1.msra.mxu0 0.0
  %845 = vmatprep.subr.mxu0 0.0
  %846 = vmatpush1.msra.mxu0 0.0
  %847 = vmatprep.subr.mxu0 0.0
  %848 = vmatpush1.msra.mxu0 0.0
  %849 = vmatprep.subr.mxu0 0.0
  %850 = vmatpush1.msra.mxu0 0.0
  %851 = vmatprep.subr.mxu0 0.0
  %852 = vmatpush1.msra.mxu0 0.0
  %853 = vmatprep.subr.mxu0 0.0
  %854 = vmatpush1.msra.mxu0 0.0
  %855 = vmatprep.subr.mxu0 0.0
  %856 = vmatpush1.msra.mxu0 0.0
  %857 = vmatprep.subr.mxu0 0.0
  %858 = vmatpush1.msra.mxu0 0.0
  %859 = vmatprep.subr.mxu0 0.0
  %860 = vmatpush1.msra.mxu0 0.0
  %861 = vmatprep.subr.mxu0 0.0
  %862 = vmatpush1.msra.mxu0 0.0
  %863 = vmatprep.subr.mxu0 0.0
  %864 = vmatpush1.msra.mxu0 0.0
  %865 = vmatprep.subr.mxu0 0.0
  %866 = vmatpush1.msra.mxu0 0.0
  %867 = vmatprep.subr.mxu0 0.0
  %868 = vmatpush1.msra.mxu0 0.0
  %869 = vmatprep.subr.mxu0 0.0
  %870 = vmatpush1.msra.mxu0 0.0
  %871 = vmatprep.subr.mxu0 0.0
  %872 = vmatpush1.msra.mxu0 0.0
  %873 = vmatprep.subr.mxu0 0.0
  %874 = vmatpush1.msra.mxu0 0.0
  %875 = vmatprep.subr.mxu0 0.0
  %876 = vmatpush1.msra.mxu0 0.0
  %877 = vmatprep.subr.mxu0 0.0
  %878 = vmatpush1.msra.mxu0 0.0
  %879 = vmatprep.subr.mxu0 0.0
  %880 = vmatpush1.msra.mxu0 0.0
  %881 = vmatprep.subr.mxu0 0.0
  %882 = vmatpush1.msra.mxu0 0.0
  %883 = vmatprep.subr.mxu0 0.0
  %884 = vmatpush1.msra.mxu0 0.0
  %885 = vmatprep.subr.mxu0 0.0
  %886 = vmatpush1.msra.mxu0 0.0
  %887 = vmatprep.subr.mxu0 0.0
  %888 = vmatpush1.msra.mxu0 0.0
  %889 = vmatprep.subr.mxu0 0.0
  %890 = vmatpush1.msra.mxu0 0.0
  %891 = vmatprep.subr.mxu0 0.0
  %892 = vmatpush1.msra.mxu0 0.0
  %893 = vmatprep.mubr.f32.mxu0 0.0
  %894 = vmatmul.mubr.f32.gmra.mrb[0].mxu0 %v827
  %v895 = vpop.f32.mrb[0].mxu0
  %v896 = vadd.f32 0.0, %v895
  %v897 = vpop.f32.mrb[0].mxu0
  %898 = vdwg.mxu0
  %v900 = vsel %vm54, %v743, 0
  %902 = vmatprep.subr.mxu0 0.0
  %903 = vmatpush1.msra.mxu0 %v744
  %904 = vmatprep.subr.mxu0 0.0
  %905 = vmatpush1.msra.mxu0 %v745
  %906 = vmatprep.subr.mxu0 0.0
  %907 = vmatpush1.msra.mxu0 %v746
  %908 = vmatprep.subr.mxu0 0.0
  %909 = vmatpush1.msra.mxu0 %v747
  %910 = vmatprep.subr.mxu0 0.0
  %911 = vmatpush1.msra.mxu0 %v748
  %912 = vmatprep.subr.mxu0 0.0
  %913 = vmatpush1.msra.mxu0 %v749
  %914 = vmatprep.subr.mxu0 0.0
  %915 = vmatpush1.msra.mxu0 %v750
  %916 = vmatprep.subr.mxu0 0.0
  %917 = vmatpush1.msra.mxu0 %v751
  %918 = vmatprep.subr.mxu0 0.0
  %919 = vmatpush1.msra.mxu0 0.0
  %920 = vmatprep.subr.mxu0 0.0
  %921 = vmatpush1.msra.mxu0 0.0
  %922 = vmatprep.subr.mxu0 0.0
  %923 = vmatpush1.msra.mxu0 0.0
  %924 = vmatprep.subr.mxu0 0.0
  %925 = vmatpush1.msra.mxu0 0.0
  %926 = vmatprep.subr.mxu0 0.0
  %927 = vmatpush1.msra.mxu0 0.0
  %928 = vmatprep.subr.mxu0 0.0
  %929 = vmatpush1.msra.mxu0 0.0
  %930 = vmatprep.subr.mxu0 0.0
  %931 = vmatpush1.msra.mxu0 0.0
  %932 = vmatprep.subr.mxu0 0.0
  %933 = vmatpush1.msra.mxu0 0.0
  %934 = vmatprep.subr.mxu0 0.0
  %935 = vmatpush1.msra.mxu0 0.0
  %936 = vmatprep.subr.mxu0 0.0
  %937 = vmatpush1.msra.mxu0 0.0
  %938 = vmatprep.subr.mxu0 0.0
  %939 = vmatpush1.msra.mxu0 0.0
  %940 = vmatprep.subr.mxu0 0.0
  %941 = vmatpush1.msra.mxu0 0.0
  %942 = vmatprep.subr.mxu0 0.0
  %943 = vmatpush1.msra.mxu0 0.0
  %944 = vmatprep.subr.mxu0 0.0
  %945 = vmatpush1.msra.mxu0 0.0
  %946 = vmatprep.subr.mxu0 0.0
  %947 = vmatpush1.msra.mxu0 0.0
  %948 = vmatprep.subr.mxu0 0.0
  %949 = vmatpush1.msra.mxu0 0.0
  %950 = vmatprep.subr.mxu0 0.0
  %951 = vmatpush1.msra.mxu0 0.0
  %952 = vmatprep.subr.mxu0 0.0
  %953 = vmatpush1.msra.mxu0 0.0
  %954 = vmatprep.subr.mxu0 0.0
  %955 = vmatpush1.msra.mxu0 0.0
  %956 = vmatprep.subr.mxu0 0.0
  %957 = vmatpush1.msra.mxu0 0.0
  %958 = vmatprep.subr.mxu0 0.0
  %959 = vmatpush1.msra.mxu0 0.0
  %960 = vmatprep.subr.mxu0 0.0
  %961 = vmatpush1.msra.mxu0 0.0
  %962 = vmatprep.subr.mxu0 0.0
  %963 = vmatpush1.msra.mxu0 0.0
  %964 = vmatprep.subr.mxu0 0.0
  %965 = vmatpush1.msra.mxu0 0.0
  %966 = vmatprep.mubr.f32.mxu0 0.0
  %967 = vmatmul.mubr.f32.gmra.mrb[0].mxu0 %v900
  %v968 = vpop.f32.mrb[0].mxu0
  %v969 = vadd.f32 0.0, %v968
  %v970 = vpop.f32.mrb[0].mxu0
  %971 = vdwg.mxu0
  %v973 = vsel %vm65, %v969, 0
  %975 = vmatprep.subr.mxu0 0.0
  %976 = vmatpush1.msra.mxu0 %v825
  %977 = vmatprep.subr.mxu0 0.0
  %978 = vmatpush1.msra.mxu0 0.0
  %979 = vmatprep.subr.mxu0 0.0
  %980 = vmatpush1.msra.mxu0 0.0
  %981 = vmatprep.subr.mxu0 0.0
  %982 = vmatpush1.msra.mxu0 0.0
  %983 = vmatprep.subr.mxu0 0.0
  %984 = vmatpush1.msra.mxu0 0.0
  %985 = vmatprep.subr.mxu0 0.0
  %986 = vmatpush1.msra.mxu0 0.0
  %987 = vmatprep.subr.mxu0 0.0
  %988 = vmatpush1.msra.mxu0 0.0
  %989 = vmatprep.subr.mxu0 0.0
  %990 = vmatpush1.msra.mxu0 0.0
  %991 = vmatprep.subr.mxu0 0.0
  %992 = vmatpush1.msra.mxu0 0.0
  %993 = vmatprep.subr.mxu0 0.0
  %994 = vmatpush1.msra.mxu0 0.0
  %995 = vmatprep.subr.mxu0 0.0
  %996 = vmatpush1.msra.mxu0 0.0
  %997 = vmatprep.subr.mxu0 0.0
  %998 = vmatpush1.msra.mxu0 0.0
  %999 = vmatprep.subr.mxu0 0.0
  %1000 = vmatpush1.msra.mxu0 0.0
  %1001 = vmatprep.subr.mxu0 0.0
  %1002 = vmatpush1.msra.mxu0 0.0
  %1003 = vmatprep.subr.mxu0 0.0
  %1004 = vmatpush1.msra.mxu0 0.0
  %1005 = vmatprep.subr.mxu0 0.0
  %1006 = vmatpush1.msra.mxu0 0.0
  %1007 = vmatprep.subr.mxu0 0.0
  %1008 = vmatpush1.msra.mxu0 0.0
  %1009 = vmatprep.subr.mxu0 0.0
  %1010 = vmatpush1.msra.mxu0 0.0
  %1011 = vmatprep.subr.mxu0 0.0
  %1012 = vmatpush1.msra.mxu0 0.0
  %1013 = vmatprep.subr.mxu0 0.0
  %1014 = vmatpush1.msra.mxu0 0.0
  %1015 = vmatprep.subr.mxu0 0.0
  %1016 = vmatpush1.msra.mxu0 0.0
  %1017 = vmatprep.subr.mxu0 0.0
  %1018 = vmatpush1.msra.mxu0 0.0
  %1019 = vmatprep.subr.mxu0 0.0
  %1020 = vmatpush1.msra.mxu0 0.0
  %1021 = vmatprep.subr.mxu0 0.0
  %1022 = vmatpush1.msra.mxu0 0.0
  %1023 = vmatprep.subr.mxu0 0.0
  %1024 = vmatpush1.msra.mxu0 0.0
  %1025 = vmatprep.subr.mxu0 0.0
  %1026 = vmatpush1.msra.mxu0 0.0
  %1027 = vmatprep.subr.mxu0 0.0
  %1028 = vmatpush1.msra.mxu0 0.0
  %1029 = vmatprep.subr.mxu0 0.0
  %1030 = vmatpush1.msra.mxu0 0.0
  %1031 = vmatprep.subr.mxu0 0.0
  %1032 = vmatpush1.msra.mxu0 0.0
  %1033 = vmatprep.subr.mxu0 0.0
  %1034 = vmatpush1.msra.mxu0 0.0
  %1035 = vmatprep.subr.mxu0 0.0
  %1036 = vmatpush1.msra.mxu0 0.0
  %1037 = vmatprep.subr.mxu0 0.0
  %1038 = vmatpush1.msra.mxu0 0.0
  %1039 = vmatprep.mubr.f32.mxu0 0.0
  %1040 = vmatmul.mubr.f32.gmra.mrb[0].mxu0 %v973
  %v1041 = vpop.f32.mrb[0].mxu0
  %v1042 = vadd.f32 0.0, %v1041
  %v1043 = vpop.f32.mrb[0].mxu0
  %1044 = vdwg.mxu0
  %v1045 = vmul.f32 %v896, %v896
  %v1046 = vsub.f32 %v1042, %v1045
  %v1047 = vld [vmem:[%s5] sm:$0x1]
  %v1048 = vadd.f32 %v1046, 1e-05
  %v1049 = vrsqrt.pop %v1048
  %v1050 = vmul.f32 %v1047, %v1049
  %v1051 = vld [vmem:[%s6] sm:$0x1]
  %v1052 = vmul.f32 %v896, %v1050
  %v1053 = vsub.f32 %v1051, %v1052
  %v1055 = vlaneseq
  %v1056 = vshrl.u32 %v1055, 7
  %v1057 = vsub.s32 0, %v1056
  %v1058 = vrot.slane %v1050, %v1057
  %v1060 = vmul.f32 %v662, %v1058
  %v1061 = vmul.f32 %v663, %v1058
  %v1062 = vmul.f32 %v664, %v1058
  %v1063 = vmul.f32 %v665, %v1058
  %v1064 = vmul.f32 %v666, %v1058
  %v1065 = vmul.f32 %v667, %v1058
  %v1067 = vlaneseq
  %v1068 = vshrl.u32 %v1067, 7
  %v1069 = vsub.s32 0, %v1068
  %v1070 = vrot.slane %v1053, %v1069
  %v1072 = vadd.f32 %v1060, %v1070
  %v1073 = vadd.f32 %v1061, %v1070
  %v1074 = vadd.f32 %v1062, %v1070
  %v1075 = vadd.f32 %v1063, %v1070
  %v1076 = vadd.f32 %v1064, %v1070
  %v1077 = vadd.f32 %v1065, %v1070
  %v1078 = vmax.f32 %v1072, 0.0
  %v1079 = vmax.f32 %v1073, 0.0
  %v1080 = vmax.f32 %v1074, 0.0
  %v1081 = vmax.f32 %v1075, 0.0
  %v1082 = vmax.f32 %v1076, 0.0
  %v1083 = vmax.f32 %v1077, 0.0
  %v1084 = vmul.f32 %v1078, %v671
  %v1085 = vmul.f32 %v1079, %v676
  %v1086 = vmul.f32 %v1080, %v681
  %v1087 = vmul.f32 %v1081, %v686
  %v1088 = vmul.f32 %v1082, %v691
  %v1089 = vmul.f32 %v1083, %v696
  %v1090 = vrot.slane %v1084, 7
  %v1091 = vrot.slane %v1085, 7
  %v1092 = vrot.slane %v1086, 7
  %v1093 = vrot.slane %v1087, 7
  %v1094 = vrot.slane %v1088, 7
  %v1095 = vrot.slane %v1089, 7
  %v1096 = vsel %vm288, %v1094, %v1095
  %v1097 = vsel %vm288, %v1093, %v1094
  %v1098 = vsel %vm288, %v1092, %v1093
  %v1099 = vsel %vm288, %v1091, %v1092
  %v1100 = vsel %vm288, %v1090, %v1091
  %v1101 = vsel %vm288, %v1095, %v1090
  %v1102 = vpack.c.bf16 %v1100, %v1101
  %v1103 = vpack.c.bf16 %v1098, %v1099
  %v1104 = vpack.c.bf16 %v1096, %v1097
  %v1105 = vld [vmem:[%s4] sm:$0xf]
  %v1106 = vld [vmem:[%s4 + $0x4] sm:$0xf]
  %v1107 = vld [vmem:[%s4 + $0x8] sm:$0xf]
  %v1108 = vld [vmem:[%s4 + $0xc] sm:$0xf]
  %v1109 = vld [vmem:[%s4 + $0x10] sm:$0xf]
  %v1110 = vld [vmem:[%s4 + $0x14] sm:$0xf]
  %v1111 = vld [vmem:[%s4 + $0x18] sm:$0xf]
  %v1112 = vld [vmem:[%s4 + $0x1c] sm:$0xf]
  %v1113 = vpack.c.bf16 %v1085, %v1084
  %v1114 = vpack.c.bf16 %v1087, %v1086
  %v1115 = vpack.c.bf16 %v1089, %v1088
  %s1116 = scalar_lea.vmem %s4, 32
  %v1117 = vld [vmem:[%s1116] sm:$0xf]
  %v1118 = vld [vmem:[%s1116 + $0x4] sm:$0xf]
  %v1119 = vld [vmem:[%s1116 + $0x8] sm:$0xf]
  %v1120 = vld [vmem:[%s1116 + $0xc] sm:$0xf]
  %v1121 = vld [vmem:[%s1116 + $0x10] sm:$0xf]
  %v1122 = vld [vmem:[%s1116 + $0x14] sm:$0xf]
  %v1123 = vld [vmem:[%s1116 + $0x18] sm:$0xf]
  %v1124 = vld [vmem:[%s1116 + $0x1c] sm:$0xf]
  %v1133 = vunpack.c.l.b16 %v1117
  %v1134 = vunpack.c.l.b16 %v1118
  %v1135 = vunpack.c.l.b16 %v1119
  %v1136 = vunpack.c.l.b16 %v1120
  %v1137 = vunpack.c.l.b16 %v1121
  %v1138 = vunpack.c.l.b16 %v1122
  %v1139 = vunpack.c.l.b16 %v1123
  %v1140 = vunpack.c.l.b16 %v1124
  %v1141 = vpack.c.b16 %v1134, %v1133
  %v1142 = vpack.c.b16 %v1136, %v1135
  %v1143 = vpack.c.b16 %v1138, %v1137
  %v1144 = vpack.c.b16 %v1140, %v1139
  %v1150 = vsel %vm54, %v1113, 0
  %v1153 = vsel %vm54, %v1114, 0
  %v1156 = vsel %vm54, %v1115, 0
  %1158 = vmatprep.subr.bf16.mxu0 0
  %1159 = vmatpush1.bf16.msra.mxu0 %v1141
  %1160 = vmatprep.subr.bf16.mxu0 0
  %1161 = vmatpush1.bf16.msra.mxu0 %v1142
  %1162 = vmatprep.subr.bf16.mxu0 0
  %1163 = vmatpush1.bf16.msra.mxu0 %v1143
  %1164 = vmatprep.subr.bf16.mxu0 0
  %1165 = vmatpush1.bf16.msra.mxu0 %v1144
  %1166 = vmatprep.subr.bf16.mxu0 0
  %1167 = vmatpush1.bf16.msra.mxu0 0
  %1168 = vmatprep.subr.bf16.mxu0 0
  %1169 = vmatpush1.bf16.msra.mxu0 0
  %1170 = vmatprep.subr.bf16.mxu0 0
  %1171 = vmatpush1.bf16.msra.mxu0 0
  %1172 = vmatprep.subr.bf16.mxu0 0
  %1173 = vmatpush1.bf16.msra.mxu0 0
  %1174 = vmatprep.subr.bf16.mxu0 0
  %1175 = vmatpush1.bf16.msra.mxu0 0
  %1176 = vmatprep.subr.bf16.mxu0 0
  %1177 = vmatpush1.bf16.msra.mxu0 0
  %1178 = vmatprep.subr.bf16.mxu0 0
  %1179 = vmatpush1.bf16.msra.mxu0 0
  %1180 = vmatprep.subr.bf16.mxu0 0
  %1181 = vmatpush1.bf16.msra.mxu0 0
  %1182 = vmatprep.subr.bf16.mxu0 0
  %1183 = vmatpush1.bf16.msra.mxu0 0
  %1184 = vmatprep.subr.bf16.mxu0 0
  %1185 = vmatpush1.bf16.msra.mxu0 0
  %1186 = vmatprep.subr.bf16.mxu0 0
  %1187 = vmatpush1.bf16.msra.mxu0 0
  %1188 = vmatprep.subr.bf16.mxu0 0
  %1189 = vmatpush1.bf16.msra.mxu0 0
  %1190 = vmatprep.mubr.bf16.mxu0 0
  %1191 = vmatmul.mubr.bf16.gmra.mrb[0].mxu0 %v1150
  %v1192 = vpop.f32.mrb[0].mxu0
  %v1193 = vadd.f32 0.0, %v1192
  %v1194 = vpop.f32.mrb[0].mxu0
  %v1195 = vpop.f32.mrb[0].mxu0
  %v1196 = vadd.f32 0.0, %v1195
  %v1197 = vpop.f32.mrb[0].mxu0
  %1198 = vmatprep.mubr.bf16.mxu0 0
  %1199 = vmatmul.mubr.bf16.gmra.mrb[0].mxu0 %v1153
  %v1200 = vpop.f32.mrb[0].mxu0
  %v1201 = vadd.f32 0.0, %v1200
  %v1202 = vpop.f32.mrb[0].mxu0
  %v1203 = vpop.f32.mrb[0].mxu0
  %v1204 = vadd.f32 0.0, %v1203
  %v1205 = vpop.f32.mrb[0].mxu0
  %1206 = vmatprep.mubr.bf16.mxu0 0
  %1207 = vmatmul.mubr.bf16.gmra.mrb[0].mxu0 %v1156
  %v1208 = vpop.f32.mrb[0].mxu0
  %v1209 = vadd.f32 0.0, %v1208
  %v1210 = vpop.f32.mrb[0].mxu0
  %v1211 = vpop.f32.mrb[0].mxu0
  %v1212 = vadd.f32 0.0, %v1211
  %v1213 = vpop.f32.mrb[0].mxu0
  %1214 = vdwg.mxu0
  %v1223 = vunpack.c.l.b16 %v1105
  %v1224 = vunpack.c.l.b16 %v1106
  %v1225 = vunpack.c.l.b16 %v1107
  %v1226 = vunpack.c.l.b16 %v1108
  %v1227 = vunpack.c.l.b16 %v1109
  %v1228 = vunpack.c.l.b16 %v1110
  %v1229 = vunpack.c.l.b16 %v1111
  %v1230 = vunpack.c.l.b16 %v1112
  %v1231 = vpack.c.b16 %v1224, %v1223
  %v1232 = vpack.c.b16 %v1226, %v1225
  %v1233 = vpack.c.b16 %v1228, %v1227
  %v1234 = vpack.c.b16 %v1230, %v1229
  %v1240 = vsel %vm54, %v1102, 0
  %v1243 = vsel %vm54, %v1103, 0
  %v1246 = vsel %vm54, %v1104, 0
  %1248 = vmatprep.subr.bf16.mxu0 0
  %1249 = vmatpush1.bf16.msra.mxu0 %v1231
  %1250 = vmatprep.subr.bf16.mxu0 0
  %1251 = vmatpush1.bf16.msra.mxu0 %v1232
  %1252 = vmatprep.subr.bf16.mxu0 0
  %1253 = vmatpush1.bf16.msra.mxu0 %v1233
  %1254 = vmatprep.subr.bf16.mxu0 0
  %1255 = vmatpush1.bf16.msra.mxu0 %v1234
  %1256 = vmatprep.subr.bf16.mxu0 0
  %1257 = vmatpush1.bf16.msra.mxu0 0
  %1258 = vmatprep.subr.bf16.mxu0 0
  %1259 = vmatpush1.bf16.msra.mxu0 0
  %1260 = vmatprep.subr.bf16.mxu0 0
  %1261 = vmatpush1.bf16.msra.mxu0 0
  %1262 = vmatprep.subr.bf16.mxu0 0
  %1263 = vmatpush1.bf16.msra.mxu0 0
  %1264 = vmatprep.subr.bf16.mxu0 0
  %1265 = vmatpush1.bf16.msra.mxu0 0
  %1266 = vmatprep.subr.bf16.mxu0 0
  %1267 = vmatpush1.bf16.msra.mxu0 0
  %1268 = vmatprep.subr.bf16.mxu0 0
  %1269 = vmatpush1.bf16.msra.mxu0 0
  %1270 = vmatprep.subr.bf16.mxu0 0
  %1271 = vmatpush1.bf16.msra.mxu0 0
  %1272 = vmatprep.subr.bf16.mxu0 0
  %1273 = vmatpush1.bf16.msra.mxu0 0
  %1274 = vmatprep.subr.bf16.mxu0 0
  %1275 = vmatpush1.bf16.msra.mxu0 0
  %1276 = vmatprep.subr.bf16.mxu0 0
  %1277 = vmatpush1.bf16.msra.mxu0 0
  %1278 = vmatprep.subr.bf16.mxu0 0
  %1279 = vmatpush1.bf16.msra.mxu0 0
  %1280 = vmatprep.mubr.bf16.mxu0 0
  %1281 = vmatmul.mubr.bf16.gmra.mrb[0].mxu0 %v1240
  %v1282 = vpop.f32.mrb[0].mxu0
  %v1283 = vadd.f32 %v1193, %v1282
  %v1284 = vpop.f32.mrb[0].mxu0
  %v1285 = vpop.f32.mrb[0].mxu0
  %v1286 = vadd.f32 %v1196, %v1285
  %v1287 = vpop.f32.mrb[0].mxu0
  %1288 = vmatprep.mubr.bf16.mxu0 0
  %1289 = vmatmul.mubr.bf16.gmra.mrb[0].mxu0 %v1243
  %v1290 = vpop.f32.mrb[0].mxu0
  %v1291 = vadd.f32 %v1201, %v1290
  %v1292 = vpop.f32.mrb[0].mxu0
  %v1293 = vpop.f32.mrb[0].mxu0
  %v1294 = vadd.f32 %v1204, %v1293
  %v1295 = vpop.f32.mrb[0].mxu0
  %1296 = vmatprep.mubr.bf16.mxu0 0
  %1297 = vmatmul.mubr.bf16.gmra.mrb[0].mxu0 %v1246
  %v1298 = vpop.f32.mrb[0].mxu0
  %v1299 = vadd.f32 %v1209, %v1298
  %v1300 = vpop.f32.mrb[0].mxu0
  %v1301 = vpop.f32.mrb[0].mxu0
  %v1302 = vadd.f32 %v1212, %v1301
  %v1303 = vpop.f32.mrb[0].mxu0
  %1304 = vdwg.mxu0
  %v1305 = vrot.slane %v1084, 1
  %v1306 = vrot.slane %v1085, 1
  %v1307 = vrot.slane %v1086, 1
  %v1308 = vrot.slane %v1087, 1
  %v1309 = vrot.slane %v1088, 1
  %v1310 = vrot.slane %v1089, 1
  %v1311 = vsel %vm537, %v1309, %v1310
  %v1312 = vsel %vm537, %v1308, %v1309
  %v1313 = vsel %vm537, %v1307, %v1308
  %v1314 = vsel %vm537, %v1306, %v1307
  %v1315 = vsel %vm537, %v1305, %v1306
  %v1316 = vsel %vm537, %v1310, %v1305
  %v1317 = vpack.c.bf16 %v1314, %v1315
  %v1318 = vpack.c.bf16 %v1312, %v1313
  %v1319 = vpack.c.bf16 %v1316, %v1311
  %s1320 = scalar_lea.vmem %s4, 64
  %v1321 = vld [vmem:[%s1320] sm:$0xf]
  %v1322 = vld [vmem:[%s1320 + $0x4] sm:$0xf]
  %v1323 = vld [vmem:[%s1320 + $0x8] sm:$0xf]
  %v1324 = vld [vmem:[%s1320 + $0xc] sm:$0xf]
  %v1325 = vld [vmem:[%s1320 + $0x10] sm:$0xf]
  %v1326 = vld [vmem:[%s1320 + $0x14] sm:$0xf]
  %v1327 = vld [vmem:[%s1320 + $0x18] sm:$0xf]
  %v1328 = vld [vmem:[%s1320 + $0x1c] sm:$0xf]
  %v1337 = vunpack.c.l.b16 %v1321
  %v1338 = vunpack.c.l.b16 %v1322
  %v1339 = vunpack.c.l.b16 %v1323
  %v1340 = vunpack.c.l.b16 %v1324
  %v1341 = vunpack.c.l.b16 %v1325
  %v1342 = vunpack.c.l.b16 %v1326
  %v1343 = vunpack.c.l.b16 %v1327
  %v1344 = vunpack.c.l.b16 %v1328
  %v1345 = vpack.c.b16 %v1338, %v1337
  %v1346 = vpack.c.b16 %v1340, %v1339
  %v1347 = vpack.c.b16 %v1342, %v1341
  %v1348 = vpack.c.b16 %v1344, %v1343
  %v1354 = vsel %vm54, %v1317, 0
  %v1357 = vsel %vm54, %v1318, 0
  %v1360 = vsel %vm54, %v1319, 0
  %1362 = vmatprep.subr.bf16.mxu0 0
  %1363 = vmatpush1.bf16.msra.mxu0 %v1345
  %1364 = vmatprep.subr.bf16.mxu0 0
  %1365 = vmatpush1.bf16.msra.mxu0 %v1346
  %1366 = vmatprep.subr.bf16.mxu0 0
  %1367 = vmatpush1.bf16.msra.mxu0 %v1347
  %1368 = vmatprep.subr.bf16.mxu0 0
  %1369 = vmatpush1.bf16.msra.mxu0 %v1348
  %1370 = vmatprep.subr.bf16.mxu0 0
  %1371 = vmatpush1.bf16.msra.mxu0 0
  %1372 = vmatprep.subr.bf16.mxu0 0
  %1373 = vmatpush1.bf16.msra.mxu0 0
  %1374 = vmatprep.subr.bf16.mxu0 0
  %1375 = vmatpush1.bf16.msra.mxu0 0
  %1376 = vmatprep.subr.bf16.mxu0 0
  %1377 = vmatpush1.bf16.msra.mxu0 0
  %1378 = vmatprep.subr.bf16.mxu0 0
  %1379 = vmatpush1.bf16.msra.mxu0 0
  %1380 = vmatprep.subr.bf16.mxu0 0
  %1381 = vmatpush1.bf16.msra.mxu0 0
  %1382 = vmatprep.subr.bf16.mxu0 0
  %1383 = vmatpush1.bf16.msra.mxu0 0
  %1384 = vmatprep.subr.bf16.mxu0 0
  %1385 = vmatpush1.bf16.msra.mxu0 0
  %1386 = vmatprep.subr.bf16.mxu0 0
  %1387 = vmatpush1.bf16.msra.mxu0 0
  %1388 = vmatprep.subr.bf16.mxu0 0
  %1389 = vmatpush1.bf16.msra.mxu0 0
  %1390 = vmatprep.subr.bf16.mxu0 0
  %1391 = vmatpush1.bf16.msra.mxu0 0
  %1392 = vmatprep.subr.bf16.mxu0 0
  %1393 = vmatpush1.bf16.msra.mxu0 0
  %1394 = vmatprep.mubr.bf16.mxu0 0
  %1395 = vmatmul.mubr.bf16.gmra.mrb[0].mxu0 %v1354
  %v1396 = vpop.f32.mrb[0].mxu0
  %v1397 = vadd.f32 0.0, %v1396
  %v1398 = vpop.f32.mrb[0].mxu0
  %v1399 = vpop.f32.mrb[0].mxu0
  %v1400 = vadd.f32 0.0, %v1399
  %v1401 = vpop.f32.mrb[0].mxu0
  %1402 = vmatprep.mubr.bf16.mxu0 0
  %1403 = vmatmul.mubr.bf16.gmra.mrb[0].mxu0 %v1357
  %v1404 = vpop.f32.mrb[0].mxu0
  %v1405 = vadd.f32 0.0, %v1404
  %v1406 = vpop.f32.mrb[0].mxu0
  %v1407 = vpop.f32.mrb[0].mxu0
  %v1408 = vadd.f32 0.0, %v1407
  %v1409 = vpop.f32.mrb[0].mxu0
  %1410 = vmatprep.mubr.bf16.mxu0 0
  %1411 = vmatmul.mubr.bf16.gmra.mrb[0].mxu0 %v1360
  %v1412 = vpop.f32.mrb[0].mxu0
  %v1413 = vadd.f32 0.0, %v1412
  %v1414 = vpop.f32.mrb[0].mxu0
  %v1415 = vpop.f32.mrb[0].mxu0
  %v1416 = vadd.f32 0.0, %v1415
  %v1417 = vpop.f32.mrb[0].mxu0
  %1418 = vdwg.mxu0
  %v1419 = vadd.f32 %v1283, %v1397
  %v1420 = vadd.f32 %v1286, %v1400
  %v1421 = vadd.f32 %v1291, %v1405
  %v1422 = vadd.f32 %v1294, %v1408
  %v1423 = vadd.f32 %v1299, %v1413
  %v1424 = vadd.f32 %v1302, %v1416
  %v1425 = vmul.f32 %v1419, %v671
  %v1426 = vmul.f32 %v1420, %v676
  %v1427 = vmul.f32 %v1421, %v681
  %v1428 = vmul.f32 %v1422, %v686
  %v1429 = vmul.f32 %v1423, %v691
  %v1430 = vmul.f32 %v1424, %v696
  %v1431 = vsel %vm54, %v1425, 0.0
  %v1432 = vsel %vm54, %v1426, 0.0
  %v1433 = vadd.f32 %v1431, %v1432
  %v1434 = vsel %vm54, %v1427, 0.0
  %v1435 = vadd.f32 %v1433, %v1434
  %v1436 = vsel %vm54, %v1428, 0.0
  %v1437 = vadd.f32 %v1435, %v1436
  %v1438 = vsel %vm54, %v1429, 0.0
  %v1439 = vadd.f32 %v1437, %v1438
  %v1440 = vsel %vm54, %v1430, 0.0
  %v1441 = vadd.f32 %v1439, %v1440
  %v1442 = vrot.slane %v1441, 4
  %v1443 = vadd.f32 %v1441, %v1442
  %v1444 = vrot.slane %v1443, 2
  %v1445 = vadd.f32 %v1443, %v1444
  %v1446 = vrot.slane %v1445, 1
  %v1447 = vadd.f32 %v1445, %v1446
  %v1448 = vmul.f32 %v1425, %v1419
  %v1449 = vmul.f32 %v1426, %v1420
  %v1450 = vmul.f32 %v1427, %v1421
  %v1451 = vmul.f32 %v1428, %v1422
  %v1452 = vmul.f32 %v1429, %v1423
  %v1453 = vmul.f32 %v1430, %v1424
  %v1454 = vsel %vm54, %v1448, 0.0
  %v1455 = vsel %vm54, %v1449, 0.0
  %v1456 = vadd.f32 %v1454, %v1455
  %v1457 = vsel %vm54, %v1450, 0.0
  %v1458 = vadd.f32 %v1456, %v1457
  %v1459 = vsel %vm54, %v1451, 0.0
  %v1460 = vadd.f32 %v1458, %v1459
  %v1461 = vsel %vm54, %v1452, 0.0
  %v1462 = vadd.f32 %v1460, %v1461
  %v1463 = vsel %vm54, %v1453, 0.0
  %v1464 = vadd.f32 %v1462, %v1463
  %v1465 = vrot.slane %v1464, 4
  %v1466 = vadd.f32 %v1464, %v1465
  %v1467 = vrot.slane %v1466, 2
  %v1468 = vadd.f32 %v1466, %v1467
  %v1469 = vrot.slane %v1468, 1
  %v1470 = vadd.f32 %v1468, %v1469
  %v1471 = vld [vmem:[%s11] sm:$0xff]
  %v1472 = vld [vmem:[%s11 + $0x8] sm:$0xff]
  %v1473 = vld [vmem:[%s11 + $0x10] sm:$0xff]
  %v1474 = vld [vmem:[%s11 + $0x18] sm:$0xff]
  %v1475 = vld [vmem:[%s11 + $0x20] sm:$0xff]
  %v1476 = vld [vmem:[%s11 + $0x28] sm:$0xff]
  %v1477 = vld [vmem:[%s11 + $0x30] sm:$0xff]
  %v1478 = vld [vmem:[%s11 + $0x38] sm:$0xff]
  %v1480 = vsel %vm54, %v1447, 0
  %1482 = vmatprep.subr.mxu0 0.0
  %1483 = vmatpush1.msra.mxu0 %v1471
  %1484 = vmatprep.subr.mxu0 0.0
  %1485 = vmatpush1.msra.mxu0 %v1472
  %1486 = vmatprep.subr.mxu0 0.0
  %1487 = vmatpush1.msra.mxu0 %v1473
  %1488 = vmatprep.subr.mxu0 0.0
  %1489 = vmatpush1.msra.mxu0 %v1474
  %1490 = vmatprep.subr.mxu0 0.0
  %1491 = vmatpush1.msra.mxu0 %v1475
  %1492 = vmatprep.subr.mxu0 0.0
  %1493 = vmatpush1.msra.mxu0 %v1476
  %1494 = vmatprep.subr.mxu0 0.0
  %1495 = vmatpush1.msra.mxu0 %v1477
  %1496 = vmatprep.subr.mxu0 0.0
  %1497 = vmatpush1.msra.mxu0 %v1478
  %1498 = vmatprep.subr.mxu0 0.0
  %1499 = vmatpush1.msra.mxu0 0.0
  %1500 = vmatprep.subr.mxu0 0.0
  %1501 = vmatpush1.msra.mxu0 0.0
  %1502 = vmatprep.subr.mxu0 0.0
  %1503 = vmatpush1.msra.mxu0 0.0
  %1504 = vmatprep.subr.mxu0 0.0
  %1505 = vmatpush1.msra.mxu0 0.0
  %1506 = vmatprep.subr.mxu0 0.0
  %1507 = vmatpush1.msra.mxu0 0.0
  %1508 = vmatprep.subr.mxu0 0.0
  %1509 = vmatpush1.msra.mxu0 0.0
  %1510 = vmatprep.subr.mxu0 0.0
  %1511 = vmatpush1.msra.mxu0 0.0
  %1512 = vmatprep.subr.mxu0 0.0
  %1513 = vmatpush1.msra.mxu0 0.0
  %1514 = vmatprep.subr.mxu0 0.0
  %1515 = vmatpush1.msra.mxu0 0.0
  %1516 = vmatprep.subr.mxu0 0.0
  %1517 = vmatpush1.msra.mxu0 0.0
  %1518 = vmatprep.subr.mxu0 0.0
  %1519 = vmatpush1.msra.mxu0 0.0
  %1520 = vmatprep.subr.mxu0 0.0
  %1521 = vmatpush1.msra.mxu0 0.0
  %1522 = vmatprep.subr.mxu0 0.0
  %1523 = vmatpush1.msra.mxu0 0.0
  %1524 = vmatprep.subr.mxu0 0.0
  %1525 = vmatpush1.msra.mxu0 0.0
  %1526 = vmatprep.subr.mxu0 0.0
  %1527 = vmatpush1.msra.mxu0 0.0
  %1528 = vmatprep.subr.mxu0 0.0
  %1529 = vmatpush1.msra.mxu0 0.0
  %1530 = vmatprep.subr.mxu0 0.0
  %1531 = vmatpush1.msra.mxu0 0.0
  %1532 = vmatprep.subr.mxu0 0.0
  %1533 = vmatpush1.msra.mxu0 0.0
  %1534 = vmatprep.subr.mxu0 0.0
  %1535 = vmatpush1.msra.mxu0 0.0
  %1536 = vmatprep.subr.mxu0 0.0
  %1537 = vmatpush1.msra.mxu0 0.0
  %1538 = vmatprep.subr.mxu0 0.0
  %1539 = vmatpush1.msra.mxu0 0.0
  %1540 = vmatprep.subr.mxu0 0.0
  %1541 = vmatpush1.msra.mxu0 0.0
  %1542 = vmatprep.subr.mxu0 0.0
  %1543 = vmatpush1.msra.mxu0 0.0
  %1544 = vmatprep.subr.mxu0 0.0
  %1545 = vmatpush1.msra.mxu0 0.0
  %1546 = vmatprep.mubr.f32.mxu0 0.0
  %1547 = vmatmul.mubr.f32.gmra.mrb[0].mxu0 %v1480
  %v1548 = vpop.f32.mrb[0].mxu0
  %v1549 = vadd.f32 0.0, %v1548
  %v1550 = vpop.f32.mrb[0].mxu0
  %1551 = vdwg.mxu0
  %v1552 = vld [vmem:[%s12] sm:$0xff]
  %v1554 = vsel %vm65, %v1549, 0
  %1556 = vmatprep.subr.mxu0 0.0
  %1557 = vmatpush1.msra.mxu0 %v1552
  %1558 = vmatprep.subr.mxu0 0.0
  %1559 = vmatpush1.msra.mxu0 0.0
  %1560 = vmatprep.subr.mxu0 0.0
  %1561 = vmatpush1.msra.mxu0 0.0
  %1562 = vmatprep.subr.mxu0 0.0
  %1563 = vmatpush1.msra.mxu0 0.0
  %1564 = vmatprep.subr.mxu0 0.0
  %1565 = vmatpush1.msra.mxu0 0.0
  %1566 = vmatprep.subr.mxu0 0.0
  %1567 = vmatpush1.msra.mxu0 0.0
  %1568 = vmatprep.subr.mxu0 0.0
  %1569 = vmatpush1.msra.mxu0 0.0
  %1570 = vmatprep.subr.mxu0 0.0
  %1571 = vmatpush1.msra.mxu0 0.0
  %1572 = vmatprep.subr.mxu0 0.0
  %1573 = vmatpush1.msra.mxu0 0.0
  %1574 = vmatprep.subr.mxu0 0.0
  %1575 = vmatpush1.msra.mxu0 0.0
  %1576 = vmatprep.subr.mxu0 0.0
  %1577 = vmatpush1.msra.mxu0 0.0
  %1578 = vmatprep.subr.mxu0 0.0
  %1579 = vmatpush1.msra.mxu0 0.0
  %1580 = vmatprep.subr.mxu0 0.0
  %1581 = vmatpush1.msra.mxu0 0.0
  %1582 = vmatprep.subr.mxu0 0.0
  %1583 = vmatpush1.msra.mxu0 0.0
  %1584 = vmatprep.subr.mxu0 0.0
  %1585 = vmatpush1.msra.mxu0 0.0
  %1586 = vmatprep.subr.mxu0 0.0
  %1587 = vmatpush1.msra.mxu0 0.0
  %1588 = vmatprep.subr.mxu0 0.0
  %1589 = vmatpush1.msra.mxu0 0.0
  %1590 = vmatprep.subr.mxu0 0.0
  %1591 = vmatpush1.msra.mxu0 0.0
  %1592 = vmatprep.subr.mxu0 0.0
  %1593 = vmatpush1.msra.mxu0 0.0
  %1594 = vmatprep.subr.mxu0 0.0
  %1595 = vmatpush1.msra.mxu0 0.0
  %1596 = vmatprep.subr.mxu0 0.0
  %1597 = vmatpush1.msra.mxu0 0.0
  %1598 = vmatprep.subr.mxu0 0.0
  %1599 = vmatpush1.msra.mxu0 0.0
  %1600 = vmatprep.subr.mxu0 0.0
  %1601 = vmatpush1.msra.mxu0 0.0
  %1602 = vmatprep.subr.mxu0 0.0
  %1603 = vmatpush1.msra.mxu0 0.0
  %1604 = vmatprep.subr.mxu0 0.0
  %1605 = vmatpush1.msra.mxu0 0.0
  %1606 = vmatprep.subr.mxu0 0.0
  %1607 = vmatpush1.msra.mxu0 0.0
  %1608 = vmatprep.subr.mxu0 0.0
  %1609 = vmatpush1.msra.mxu0 0.0
  %1610 = vmatprep.subr.mxu0 0.0
  %1611 = vmatpush1.msra.mxu0 0.0
  %1612 = vmatprep.subr.mxu0 0.0
  %1613 = vmatpush1.msra.mxu0 0.0
  %1614 = vmatprep.subr.mxu0 0.0
  %1615 = vmatpush1.msra.mxu0 0.0
  %1616 = vmatprep.subr.mxu0 0.0
  %1617 = vmatpush1.msra.mxu0 0.0
  %1618 = vmatprep.subr.mxu0 0.0
  %1619 = vmatpush1.msra.mxu0 0.0
  %1620 = vmatprep.mubr.f32.mxu0 0.0
  %1621 = vmatmul.mubr.f32.gmra.mrb[0].mxu0 %v1554
  %v1622 = vpop.f32.mrb[0].mxu0
  %v1623 = vadd.f32 0.0, %v1622
  %v1624 = vpop.f32.mrb[0].mxu0
  %1625 = vdwg.mxu0
  %v1627 = vsel %vm54, %v1470, 0
  %1629 = vmatprep.subr.mxu0 0.0
  %1630 = vmatpush1.msra.mxu0 %v1471
  %1631 = vmatprep.subr.mxu0 0.0
  %1632 = vmatpush1.msra.mxu0 %v1472
  %1633 = vmatprep.subr.mxu0 0.0
  %1634 = vmatpush1.msra.mxu0 %v1473
  %1635 = vmatprep.subr.mxu0 0.0
  %1636 = vmatpush1.msra.mxu0 %v1474
  %1637 = vmatprep.subr.mxu0 0.0
  %1638 = vmatpush1.msra.mxu0 %v1475
  %1639 = vmatprep.subr.mxu0 0.0
  %1640 = vmatpush1.msra.mxu0 %v1476
  %1641 = vmatprep.subr.mxu0 0.0
  %1642 = vmatpush1.msra.mxu0 %v1477
  %1643 = vmatprep.subr.mxu0 0.0
  %1644 = vmatpush1.msra.mxu0 %v1478
  %1645 = vmatprep.subr.mxu0 0.0
  %1646 = vmatpush1.msra.mxu0 0.0
  %1647 = vmatprep.subr.mxu0 0.0
  %1648 = vmatpush1.msra.mxu0 0.0
  %1649 = vmatprep.subr.mxu0 0.0
  %1650 = vmatpush1.msra.mxu0 0.0
  %1651 = vmatprep.subr.mxu0 0.0
  %1652 = vmatpush1.msra.mxu0 0.0
  %1653 = vmatprep.subr.mxu0 0.0
  %1654 = vmatpush1.msra.mxu0 0.0
  %1655 = vmatprep.subr.mxu0 0.0
  %1656 = vmatpush1.msra.mxu0 0.0
  %1657 = vmatprep.subr.mxu0 0.0
  %1658 = vmatpush1.msra.mxu0 0.0
  %1659 = vmatprep.subr.mxu0 0.0
  %1660 = vmatpush1.msra.mxu0 0.0
  %1661 = vmatprep.subr.mxu0 0.0
  %1662 = vmatpush1.msra.mxu0 0.0
  %1663 = vmatprep.subr.mxu0 0.0
  %1664 = vmatpush1.msra.mxu0 0.0
  %1665 = vmatprep.subr.mxu0 0.0
  %1666 = vmatpush1.msra.mxu0 0.0
  %1667 = vmatprep.subr.mxu0 0.0
  %1668 = vmatpush1.msra.mxu0 0.0
  %1669 = vmatprep.subr.mxu0 0.0
  %1670 = vmatpush1.msra.mxu0 0.0
  %1671 = vmatprep.subr.mxu0 0.0
  %1672 = vmatpush1.msra.mxu0 0.0
  %1673 = vmatprep.subr.mxu0 0.0
  %1674 = vmatpush1.msra.mxu0 0.0
  %1675 = vmatprep.subr.mxu0 0.0
  %1676 = vmatpush1.msra.mxu0 0.0
  %1677 = vmatprep.subr.mxu0 0.0
  %1678 = vmatpush1.msra.mxu0 0.0
  %1679 = vmatprep.subr.mxu0 0.0
  %1680 = vmatpush1.msra.mxu0 0.0
  %1681 = vmatprep.subr.mxu0 0.0
  %1682 = vmatpush1.msra.mxu0 0.0
  %1683 = vmatprep.subr.mxu0 0.0
  %1684 = vmatpush1.msra.mxu0 0.0
  %1685 = vmatprep.subr.mxu0 0.0
  %1686 = vmatpush1.msra.mxu0 0.0
  %1687 = vmatprep.subr.mxu0 0.0
  %1688 = vmatpush1.msra.mxu0 0.0
  %1689 = vmatprep.subr.mxu0 0.0
  %1690 = vmatpush1.msra.mxu0 0.0
  %1691 = vmatprep.subr.mxu0 0.0
  %1692 = vmatpush1.msra.mxu0 0.0
  %1693 = vmatprep.mubr.f32.mxu0 0.0
  %1694 = vmatmul.mubr.f32.gmra.mrb[0].mxu0 %v1627
  %v1695 = vpop.f32.mrb[0].mxu0
  %v1696 = vadd.f32 0.0, %v1695
  %v1697 = vpop.f32.mrb[0].mxu0
  %1698 = vdwg.mxu0
  %v1700 = vsel %vm65, %v1696, 0
  %1702 = vmatprep.subr.mxu0 0.0
  %1703 = vmatpush1.msra.mxu0 %v1552
  %1704 = vmatprep.subr.mxu0 0.0
  %1705 = vmatpush1.msra.mxu0 0.0
  %1706 = vmatprep.subr.mxu0 0.0
  %1707 = vmatpush1.msra.mxu0 0.0
  %1708 = vmatprep.subr.mxu0 0.0
  %1709 = vmatpush1.msra.mxu0 0.0
  %1710 = vmatprep.subr.mxu0 0.0
  %1711 = vmatpush1.msra.mxu0 0.0
  %1712 = vmatprep.subr.mxu0 0.0
  %1713 = vmatpush1.msra.mxu0 0.0
  %1714 = vmatprep.subr.mxu0 0.0
  %1715 = vmatpush1.msra.mxu0 0.0
  %1716 = vmatprep.subr.mxu0 0.0
  %1717 = vmatpush1.msra.mxu0 0.0
  %1718 = vmatprep.subr.mxu0 0.0
  %1719 = vmatpush1.msra.mxu0 0.0
  %1720 = vmatprep.subr.mxu0 0.0
  %1721 = vmatpush1.msra.mxu0 0.0
  %1722 = vmatprep.subr.mxu0 0.0
  %1723 = vmatpush1.msra.mxu0 0.0
  %1724 = vmatprep.subr.mxu0 0.0
  %1725 = vmatpush1.msra.mxu0 0.0
  %1726 = vmatprep.subr.mxu0 0.0
  %1727 = vmatpush1.msra.mxu0 0.0
  %1728 = vmatprep.subr.mxu0 0.0
  %1729 = vmatpush1.msra.mxu0 0.0
  %1730 = vmatprep.subr.mxu0 0.0
  %1731 = vmatpush1.msra.mxu0 0.0
  %1732 = vmatprep.subr.mxu0 0.0
  %1733 = vmatpush1.msra.mxu0 0.0
  %1734 = vmatprep.subr.mxu0 0.0
  %1735 = vmatpush1.msra.mxu0 0.0
  %1736 = vmatprep.subr.mxu0 0.0
  %1737 = vmatpush1.msra.mxu0 0.0
  %1738 = vmatprep.subr.mxu0 0.0
  %1739 = vmatpush1.msra.mxu0 0.0
  %1740 = vmatprep.subr.mxu0 0.0
  %1741 = vmatpush1.msra.mxu0 0.0
  %1742 = vmatprep.subr.mxu0 0.0
  %1743 = vmatpush1.msra.mxu0 0.0
  %1744 = vmatprep.subr.mxu0 0.0
  %1745 = vmatpush1.msra.mxu0 0.0
  %1746 = vmatprep.subr.mxu0 0.0
  %1747 = vmatpush1.msra.mxu0 0.0
  %1748 = vmatprep.subr.mxu0 0.0
  %1749 = vmatpush1.msra.mxu0 0.0
  %1750 = vmatprep.subr.mxu0 0.0
  %1751 = vmatpush1.msra.mxu0 0.0
  %1752 = vmatprep.subr.mxu0 0.0
  %1753 = vmatpush1.msra.mxu0 0.0
  %1754 = vmatprep.subr.mxu0 0.0
  %1755 = vmatpush1.msra.mxu0 0.0
  %1756 = vmatprep.subr.mxu0 0.0
  %1757 = vmatpush1.msra.mxu0 0.0
  %1758 = vmatprep.subr.mxu0 0.0
  %1759 = vmatpush1.msra.mxu0 0.0
  %1760 = vmatprep.subr.mxu0 0.0
  %1761 = vmatpush1.msra.mxu0 0.0
  %1762 = vmatprep.subr.mxu0 0.0
  %1763 = vmatpush1.msra.mxu0 0.0
  %1764 = vmatprep.subr.mxu0 0.0
  %1765 = vmatpush1.msra.mxu0 0.0
  %1766 = vmatprep.mubr.f32.mxu0 0.0
  %1767 = vmatmul.mubr.f32.gmra.mrb[0].mxu0 %v1700
  %v1768 = vpop.f32.mrb[0].mxu0
  %v1769 = vadd.f32 0.0, %v1768
  %v1770 = vpop.f32.mrb[0].mxu0
  %1771 = vdwg.mxu0
  %v1772 = vmul.f32 %v1623, %v1623
  %v1773 = vsub.f32 %v1769, %v1772
  %v1774 = vld [vmem:[%s7] sm:$0x1]
  %v1775 = vadd.f32 %v1773, 1e-05
  %v1776 = vrsqrt.pop %v1775
  %v1777 = vmul.f32 %v1774, %v1776
  %v1778 = vld [vmem:[%s8] sm:$0x1]
  %v1779 = vmul.f32 %v1623, %v1777
  %v1780 = vsub.f32 %v1778, %v1779
  %v1782 = vlaneseq
  %v1783 = vshrl.u32 %v1782, 7
  %v1784 = vsub.s32 0, %v1783
  %v1785 = vrot.slane %v1777, %v1784
  %v1787 = vmul.f32 %v1419, %v1785
  %v1788 = vmul.f32 %v1420, %v1785
  %v1789 = vmul.f32 %v1422, %v1785
  %v1790 = vmul.f32 %v1423, %v1785
  %v1792 = vlaneseq
  %v1793 = vshrl.u32 %v1792, 7
  %v1794 = vsub.s32 0, %v1793
  %v1795 = vrot.slane %v1780, %v1794
  %v1797 = vadd.f32 %v1787, %v1795
  %v1798 = vadd.f32 %v1788, %v1795
  %v1799 = vadd.f32 %v1789, %v1795
  %v1800 = vadd.f32 %v1790, %v1795
  %v1801 = vmax.f32 %v1797, 0.0
  %v1802 = vmax.f32 %v1798, 0.0
  %v1803 = vmax.f32 %v1799, 0.0
  %v1804 = vmax.f32 %v1800, 0.0
  %1805 = vst.msk [vmem:[%s14] sm:$0xff] %vm54, %v1801
  %1806 = vst.msk [vmem:[%s14 + $0x8] sm:$0xff] %vm54, %v1802
  %1809 = vrot.lane.b32.xlu0 %v1803, 64
  %v1810 = vpop.permute.xlu0 %1809
  %1811 = vrot.lane.b32.xlu0 %v1804, 64
  %v1812 = vpop.permute.xlu0 %1811
  %vm1815 = vcmask 1048064
  %1816 = vst.msk [vmem:[%s14] sm:$0xff] %vm1815, %v1810
  %1817 = vst.msk [vmem:[%s14 + $0x8] sm:$0xff] %vm1815, %v1812
  // Predicated region
  $region58: #{up_forward.1} parent=0 // pred_check
    _
  $region59: #{up_forward.1} parent=0 // pred_check_branch
    %1819 = sbr.rel (0) target = $region61
  $region60: #{up_forward.1} parent=0 // pred_region
    _
  $region61: #{up_forward.1} parent=0 // pred_fallthru
    _
  // Predicated region
  $region62: #{up_forward.1} parent=0 // pred_check
    _
  $region63: #{up_forward.1} parent=0 // pred_check_branch
    %1821 = sbr.rel (0) target = $region65
  $region64: #{up_forward.1} parent=0 // pred_region
    _
  $region65: #{up_forward.1} parent=0 // pred_fallthru
    _

</llo_original>
